<compile_context>
chip_gen: v6e
topology: v6e:2x2x1
jax: 0.10.0
libtpu: 0.0.40
codegen_flags: <defaults>
</compile_context>

<pallas_src>
import math

import jax
import jax.numpy as jnp
from jax import lax
from jax.experimental import pallas as pl
from jax.experimental.pallas import tpu as pltpu


# -----------------------------------------------------------------------------
# Kernel 1: the recurrent loop over a chunk of the sequence.
# Grid = (batch_blocks, time_chunks); the carried hidden state lives in the
# resident (b_blk, D) output block.
# -----------------------------------------------------------------------------
def mixture_rnn_step_kernel(
    x_ref,      # (T_CHUNK, B_BLK, D) bf16 embedded tokens (time-major, unscaled)
    h_ref,      # (B_BLK, D) f32 initial hidden state
    wqkv_ref,   # (D, NF)  bf16 fused [Wq^T | Wk^T | Wv^T | Wq^T@Km^T | 0-pad]
    bqkv_ref,   # (1, NF)  f32  fused [bq | bk | bv | bq@Km^T | 0-pad]
    vm_ref,     # (M, D)   mover rows projected by V (f32 if M<=8 else bf16)
    gamma_ref,  # (1, D) f32 norm2 scale
    beta_ref,   # (1, D) f32 norm2 bias
    h_out_ref,  # (B_BLK, D) f32  -- resident output block, doubles as carry
):
    f32, bf16 = jnp.float32, jnp.bfloat16
    t_chunk, b_blk, D = x_ref.shape
    M = vm_ref.shape[0]
    mover_vpu = M <= 8           # tiny mixture: exact f32 VPU sum, no 2nd MXU op
    sqrt_d = f32(math.sqrt(D))
    inv_sqrt_d = f32(1.0 / math.sqrt(D))
    inv_dm1 = f32(1.0 / (D - 1))
    eps = f32(1e-6)

    # Initialize the carried hidden state once per batch block (first time chunk).
    @pl.when(pl.program_id(1) == 0)
    def _():
        h_out_ref[...] = h_ref[...]

    # Hoist weights / broadcasts out of the recurrent loop (once per grid step).
    wqkv = wqkv_ref[...]
    vm = vm_ref[...]
    bqkv = jnp.broadcast_to(bqkv_ref[...], (b_blk, wqkv.shape[1]))
    gamma = jnp.broadcast_to(gamma_ref[...], (b_blk, D))
    beta = jnp.broadcast_to(beta_ref[...], (b_blk, D))

    def step(i, z):
        # z <- z + x_t   (sqrt(D) embedding scale applied in f32)
        # NOTE: z is rounded to bf16 only as a matmul operand (MXU-native);
        # the carried state itself stays f32.
        z = z + x_ref[i].astype(f32) * sqrt_d                          # (B, D)

        # Single fused bf16 MXU matmul: Q, K(z), V(z) and the mover-key scores
        # (Wq^T @ Km^T folded in the wrapper) in one pass, f32 accumulation.
        qkv = jnp.dot(z.astype(bf16), wqkv, preferred_element_type=f32) + bqkv
        q, kz, vz = qkv[:, :D], qkv[:, D:2 * D], qkv[:, 2 * D:3 * D]
        s_mov = qkv[:, 3 * D:3 * D + M] * inv_sqrt_d                   # (B, M)
        s_self = jnp.sum(q * kz, axis=-1, keepdims=True) * inv_sqrt_d  # (B, 1)

        # Softmax over the (1 + M) keys; exact reciprocal (error would compound
        # through the carried state over T steps).
        s_max = jnp.maximum(jnp.max(s_mov, axis=-1, keepdims=True), s_self)
        e_self = jnp.exp(s_self - s_max)
        e_mov = jnp.exp(s_mov - s_max)
        inv_den = pl.reciprocal(e_self + jnp.sum(e_mov, axis=-1, keepdims=True))
        dg = (e_self * inv_den) * vz
        w_mov = e_mov * inv_den
        if mover_vpu:
            for m in range(M):       # unrolled exact-f32 VPU weighted sum
                dg = dg + w_mov[:, m:m + 1] * vm[m:m + 1, :]
        else:                        # bf16 MXU operands, f32 accumulation
            dg = dg + jnp.dot(w_mov.astype(bf16), vm, preferred_element_type=f32)

        # z <- LayerNorm(z + dg)   (torch-style: unbiased std, eps added to std)
        z = z + dg
        mean = jnp.mean(z, axis=-1, keepdims=True)
        zc = z - mean
        std = jnp.sqrt(jnp.sum(zc * zc, axis=-1, keepdims=True) * inv_dm1)
        return gamma * zc * pl.reciprocal(std + eps) + beta

    # Deeper unroll when vreg pressure allows (small live state per row block).
    unroll = 4 if b_blk * D <= 32 * 128 else 2
    z_final = lax.fori_loop(0, t_chunk, step, h_out_ref[...], unroll=unroll)
    h_out_ref[...] = z_final          # lane/sublane-dense (b_blk, D) store


# -----------------------------------------------------------------------------
# Kernel 2: vocab projection, single pass over V tiles (whole batch per block).
#   * writes unnormalized logits lane-dense per tile
#   * accumulates an online logsumexp in VMEM scratch, emitted on the last tile
# The (D, V) weight matrix is streamed from HBM exactly once.
# -----------------------------------------------------------------------------
def vocab_logits_kernel(h_ref, wvoc_ref, bvoc_ref, logits_ref, lse_ref, m_sc, l_sc):
    f32 = jnp.float32
    v = pl.program_id(0)

    z = h_ref[...].astype(jnp.bfloat16)                                 # (B, D)
    logits = jnp.dot(z, wvoc_ref[...], preferred_element_type=f32) + bvoc_ref[...]
    logits_ref[...] = logits                                            # (B, v_tile)

    @pl.when(v == 0)
    def _():
        m_sc[...] = jnp.full(m_sc.shape, -jnp.inf, m_sc.dtype)
        l_sc[...] = jnp.zeros(l_sc.shape, l_sc.dtype)

    m_prev = m_sc[...]
    m_new = jnp.maximum(m_prev, jnp.max(logits, axis=-1, keepdims=True))
    l_sc[...] = (l_sc[...] * jnp.exp(m_prev - m_new)
                 + jnp.sum(jnp.exp(logits - m_new), axis=-1, keepdims=True))
    m_sc[...] = m_new

    @pl.when(v == pl.num_programs(0) - 1)
    def _():
        lse_ref[...] = m_sc[...] + jnp.log(l_sc[...])


# -----------------------------------------------------------------------------
# Wrapper helpers
# -----------------------------------------------------------------------------
def _vmem_budget_bytes():
    """Per-core VMEM with headroom (64 MiB/TC on v7x, 128 MiB on v5e/v6e)."""
    try:
        cap = int(pltpu.get_tpu_info().vmem_capacity_bytes)
    except Exception:
        cap = 64 << 20            # conservative fallback (v7x-sized VMEM)
    return max(16 << 20, (cap * 3) // 4)


def _pick_batch_block(B, cap=128):
    """Largest divisor of B <= cap, preferring multiples of 16 (bf16 sublanes).
    cap=128 also keeps the matmul LHS within one MXU tile on v5e."""
    cap = min(B, cap)
    for d in range(cap, 0, -1):
        if B % d == 0 and d % 16 == 0:
            return d
    for d in range(cap, 0, -1):
        if B % d == 0:
            return d
    return B


def _pick_time_chunk(T, b_blk, D, fixed_vmem, budget, target=128):
    c = min(target, T)
    while T % c != 0:
        c -= 1
    # Shrink (staying a divisor of T) if the double-buffered x chunk blows VMEM.
    while c > 1 and fixed_vmem + 2 * (c * b_blk * D * 2) > (budget * 4) // 5:
        c -= 1
        while T % c != 0:
            c -= 1
    return c


def _pick_vocab_tile(V, target=512):
    if V % 128 != 0:
        return V
    t = (min(target, V) // 128) * 128
    while V % t != 0:
        t -= 128
    return t


# -----------------------------------------------------------------------------
# Wrapper
# -----------------------------------------------------------------------------
def mixture_rnn_forward(hidden_state, output_sequence, params,
                        *, t_chunk=None, v_tile=None, b_blk=None):
    """Pallas implementation of MixtureRNN.forward.

    hidden_state:    (B, 1, D) float32
    output_sequence: (B, T)    int32 token ids
    returns: (z (B, 1, D) float32, y (B, 1, V_out) float32 log-probs)
    """
    f32, bf16 = jnp.float32, jnp.bfloat16
    B, _, D = hidden_state.shape
    T = output_sequence.shape[1]
    V = params["wvoc"].shape[0]
    M = params["mov"].shape[0]
    mover_vpu = M <= 8
    budget = _vmem_budget_bytes()

    # --- weight preprocessing (tiny, once per call; bf16 matmul operands) ---
    # mover = (0*z + 1) * decoder_mover.weight == the weight rows; their K/V
    # projections are batch- and time-invariant -> hoisted out of the kernel.
    mov = params["mov"].astype(f32)
    km = mov @ params["wk"].T + params["bk"]                      # (M, D) mover keys
    vm = mov @ params["wv"].T + params["bv"]                      # (M, D) mover values
    # Fold the mover-key score into the fused projection:
    #   Q . km_m = (z @ Wq^T + bq) . km_m = z @ (Wq^T km_m) + bq . km_m
    wq_km = params["wq"].T @ km.T                                 # (D, M)
    bq_km = params["bq"] @ km.T                                   # (M,)
    wqkv_u = jnp.concatenate(
        [params["wq"].T, params["wk"].T, params["wv"].T, wq_km], axis=1)   # (D, 3D+M)
    bqkv_u = jnp.concatenate(
        [params["bq"], params["bk"], params["bv"], bq_km])                 # (3D+M,)
    nfu = 3 * D + M
    NF = max(128, ((nfu + 127) // 128) * 128)   # lane-align fused matmul width
    wqkv = jnp.pad(wqkv_u, ((0, 0), (0, NF - nfu))).astype(bf16)           # (D, NF)
    bqkv = jnp.pad(bqkv_u, ((0, NF - nfu),))[None, :].astype(f32)          # (1, NF)
    vm = vm.astype(f32 if mover_vpu else bf16)                             # (M, D)
    gamma = params["gamma"][None, :].astype(f32)
    beta = params["beta"][None, :].astype(f32)
    wvoc_t = params["wvoc"].T.astype(bf16)                                 # (D, V)
    bvoc = params["bvoc"][None, :].astype(f32)                             # (1, V)

    # Embedding: gather with transposed ids so x lands time-major (T, B, D).
    # TODO(synk): gather embedding rows inside the kernel (scalar-prefetched ids
    # + manual DMA from an HBM-resident table) to avoid materializing x in HBM.
    x = params["embed_out"].astype(bf16)[output_sequence.T]                # (T, B, D)
    h2 = hidden_state.reshape(B, D).astype(f32)

    # --- tiling ---
    b_blk = _pick_batch_block(B) if b_blk is None else b_blk
    weight_bytes = (D * NF * 2 + NF * 4
                    + M * D * (4 if mover_vpu else 2) + 2 * D * 4)
    state_bytes = 4 * b_blk * D * 4
    if t_chunk is None:
        t_chunk = _pick_time_chunk(T, b_blk, D, 2 * weight_bytes + state_bytes,
                                   budget)
    v_tile = _pick_vocab_tile(V) if v_tile is None else v_tile
    assert B % b_blk == 0 and T % t_chunk == 0 and V % v_tile == 0
    nb, nt, nv = B // b_blk, T // t_chunk, V // v_tile

    # ---------------- recurrence kernel ----------------
    rnn_blk_bytes = 2 * (t_chunk * b_blk * D * 2) + 2 * weight_bytes + state_bytes
    vmem_rnn = int(min(budget, max(32 << 20, 2 * rnn_blk_bytes + (4 << 20))))
    # TODO(synk): single-buffer the constant-index-map weight inputs
    # (pipeline_mode=pl.Buffered(1)) to halve their VMEM footprint at large D.
    h_out = pl.pallas_call(
        mixture_rnn_step_kernel,
        out_shape=jax.ShapeDtypeStruct((B, D), f32),
        grid=(nb, nt),
        in_specs=[
            pl.BlockSpec((t_chunk, b_blk, D), lambda b, t: (t, b, 0)),  # x (streamed)
            pl.BlockSpec((b_blk, D), lambda b, t: (b, 0)),              # h0
            pl.BlockSpec((D, NF), lambda b, t: (0, 0)),                 # fused weights
            pl.BlockSpec((1, NF), lambda b, t: (0, 0)),                 # fused bias
            pl.BlockSpec((M, D), lambda b, t: (0, 0)),                  # mover values
            pl.BlockSpec((1, D), lambda b, t: (0, 0)),                  # gamma
            pl.BlockSpec((1, D), lambda b, t: (0, 0)),                  # beta
        ],
        out_specs=pl.BlockSpec((b_blk, D), lambda b, t: (b, 0)),        # carry
        compiler_params=pltpu.CompilerParams(
            dimension_semantics=("parallel", "arbitrary"),
            vmem_limit_bytes=vmem_rnn),
        cost_estimate=pl.CostEstimate(
            flops=int(2 * T * B * D * (3 * D + M) + 16 * T * B * D),
            transcendentals=int(T * B * (M + 4)),
            bytes_accessed=int(x.size * 2 + nb * weight_bytes + 2 * B * D * 4)),
    )(x, h2, wqkv, bqkv, vm, gamma, beta)

    # ---------------- vocab projection + online logsumexp (single pass) ----------
    voc_blk_bytes = (B * D * 4 + 2 * (D * v_tile * 2 + v_tile * 4)
                     + 2 * B * v_tile * 4 + 4 * B * 4)
    vmem_voc = int(min(budget, max(32 << 20, 2 * voc_blk_bytes + (4 << 20))))
    logits, lse = pl.pallas_call(
        vocab_logits_kernel,
        out_shape=(jax.ShapeDtypeStruct((B, V), f32),
                   jax.ShapeDtypeStruct((B, 1), f32)),
        grid=(nv,),
        in_specs=[
            pl.BlockSpec((B, D), lambda v: (0, 0)),        # hidden (whole batch, resident)
            pl.BlockSpec((D, v_tile), lambda v: (0, v)),   # wvoc^T tile (streamed once)
            pl.BlockSpec((1, v_tile), lambda v: (0, v)),   # bvoc tile
        ],
        out_specs=(pl.BlockSpec((B, v_tile), lambda v: (0, v)),   # unnormalized logits
                   pl.BlockSpec((B, 1), lambda v: (0, 0))),       # logsumexp (resident)
        scratch_shapes=[pltpu.VMEM((B, 1), f32),    # running max
                        pltpu.VMEM((B, 1), f32)],   # running sum-exp
        compiler_params=pltpu.CompilerParams(
            dimension_semantics=("arbitrary",),
            vmem_limit_bytes=vmem_voc),
        cost_estimate=pl.CostEstimate(
            flops=int(2 * B * D * V),
            transcendentals=int(B * V),
            bytes_accessed=int(D * V * 2 + B * V * 4 + B * D * 4)),
    )(h_out, wvoc_t, bvoc)

    # log_softmax = logits - lse: trivial XLA broadcast-subtract over B*V f32
    # (far cheaper than re-streaming the (D, V) weights for a second pass).
    y = (logits - lse).reshape(B, 1, V)
    return h_out.reshape(B, 1, D), y


# -----------------------------------------------------------------------------
# Pure-JAX reference mirroring MixtureRNN.forward exactly (f32).
# -----------------------------------------------------------------------------
def reference_forward(hidden_state, output_sequence, params):
    B, _, D = hidden_state.shape
    M = params["mov"].shape[0]
    x = params["embed_out"][output_sequence] * jnp.float32(math.sqrt(D))  # (B,T,D)
    z = hidden_state.astype(jnp.float32)
    mover = jnp.broadcast_to(params["mov"][None, :, :], (B, M, D))

    def att(q_in, k_in, v_in):
        Q = q_in @ params["wq"].T + params["bq"]
        K = k_in @ params["wk"].T + params["bk"]
        Vv = v_in @ params["wv"].T + params["bv"]
        s = jnp.einsum("bqd,bkd->bqk", Q, K) / jnp.float32(math.sqrt(D))
        a = jax.nn.softmax(s, axis=-1)
        return jnp.einsum("bqk,bkd->bqd", a, Vv)

    for i in range(x.shape[1]):
        z = z + x[:, i:i + 1, :]
        g = jnp.concatenate([z, mover], axis=1)
        dg = att(g, g, g)
        z = z + dg[:, 0:1]
        mean = jnp.mean(z, axis=-1, keepdims=True)
        std = jnp.std(z, axis=-1, keepdims=True, ddof=1)
        z = params["gamma"] * (z - mean) / (std + 1e-6) + params["beta"]

    logits = z @ params["wvoc"].T + params["bvoc"]
    y = jax.nn.log_softmax(logits, axis=-1)
    return z, y


# -----------------------------------------------------------------------------
# Deterministic parameter init + example run
# -----------------------------------------------------------------------------
def make_params(key, embed_dim, mixture_count, output_vocab_size):
    D, M, V = embed_dim, mixture_count, output_vocab_size
    ks = jax.random.split(key, 10)
    n = lambda k, shape, s=0.1: (s * jax.random.normal(k, shape)).astype(jnp.float32)
    return dict(
        embed_out=n(ks[0], (V, D), 0.25),
        wq=n(ks[1], (D, D)), bq=n(ks[2], (D,)),
        wk=n(ks[3], (D, D)), bk=n(ks[4], (D,)),
        wv=n(ks[5], (D, D)), bv=n(ks[6], (D,)),
        mov=n(ks[7], (M, D)),
        gamma=jnp.ones((D,), jnp.float32),
        beta=jnp.zeros((D,), jnp.float32),
        wvoc=n(ks[8], (V, D)), bvoc=n(ks[9], (V,)),
    )


def quantize_params_like_kernel(params):
    """Round the matmul operands to bf16 (what the kernel consumes) and return
    f32 copies, so the kernel-vs-reference comparison reflects only in-kernel
    activation casts, not weight quantization."""
    q = dict(params)
    for k in ("embed_out", "wq", "wk", "wv", "mov", "wvoc"):
        q[k] = params[k].astype(jnp.bfloat16).astype(jnp.float32)
    return q


if __name__ == "__main__":
    B, T, D, M, V = 2, 8, 32, 4, 256

    key = jax.random.PRNGKey(0)
    k_par, k_hid, k_tok = jax.random.split(key, 3)
    params = quantize_params_like_kernel(make_params(k_par, D, M, V))
    hidden_state = (0.5 * jax.random.normal(k_hid, (B, 1, D))).astype(jnp.float32)
    output_sequence = jax.random.randint(k_tok, (B, T), 0, V, dtype=jnp.int32)

    # t_chunk=4 -> 2 time chunks (exercises the cross-grid-step carry);
    # v_tile=128 -> 2 vocab tiles (exercises the online logsumexp over V).
    h_out, y = mixture_rnn_forward(hidden_state, output_sequence, params,
                                   t_chunk=4, v_tile=128)
    h_out = jax.block_until_ready(h_out)
    y = jax.block_until_ready(y)

    h_ref, y_ref = reference_forward(hidden_state, output_sequence, params)
    assert h_out.shape == (B, 1, D) and y.shape == (B, 1, V)
    # bf16 matmul operands => ~1e-2-level agreement.
    assert jnp.allclose(h_out, h_ref, rtol=3e-2, atol=3e-2), \
        float(jnp.max(jnp.abs(h_out - h_ref)))
    assert jnp.allclose(y, y_ref, rtol=3e-2, atol=3e-2), \
        float(jnp.max(jnp.abs(y - y_ref)))

    print("KERNEL_OK")
</pallas_src>

<mosaic_0001>
module attributes {stable_mosaic.version = 11 : i64} {
  func.func @mixture_rnn_step_kernel(%arg0: i32, %arg1: i32, %arg2: memref<4x2x32xbf16, #tpu.memory_space<vmem>>, %arg3: memref<2x32xf32, #tpu.memory_space<vmem>>, %arg4: memref<32x128xbf16, #tpu.memory_space<vmem>>, %arg5: memref<1x128xf32, #tpu.memory_space<vmem>>, %arg6: memref<4x32xf32, #tpu.memory_space<vmem>>, %arg7: memref<1x32xf32, #tpu.memory_space<vmem>>, %arg8: memref<1x32xf32, #tpu.memory_space<vmem>>, %arg9: memref<2x32xf32, #tpu.memory_space<vmem>>) attributes {dimension_semantics = [#tpu.dimension_semantics<parallel>, #tpu.dimension_semantics<arbitrary>], iteration_bounds = array<i64: 1, 2>, scalar_prefetch = 0 : i64, scratch_operands = 0 : i64, tpu.core_type = #tpu.core_type<tc>, window_params = [{transform_indices = @transform_0, window_bounds = array<i64: 4, 2, 32>}, {transform_indices = @transform_1, window_bounds = array<i64: 2, 32>}, {pipeline_mode = #tpu.pipeline_mode<synchronous>, transform_indices = @transform_2, window_bounds = array<i64: 32, 128>}, {pipeline_mode = #tpu.pipeline_mode<synchronous>, transform_indices = @transform_3, window_bounds = array<i64: 1, 128>}, {pipeline_mode = #tpu.pipeline_mode<synchronous>, transform_indices = @transform_4, window_bounds = array<i64: 4, 32>}, {pipeline_mode = #tpu.pipeline_mode<synchronous>, transform_indices = @transform_5, window_bounds = array<i64: 1, 32>}, {pipeline_mode = #tpu.pipeline_mode<synchronous>, transform_indices = @transform_6, window_bounds = array<i64: 1, 32>}, {transform_indices = @transform_7, window_bounds = array<i64: 2, 32>}]} {
    %c0_i32 = arith.constant 0 : i32
    %0 = arith.cmpi eq, %arg1, %c0_i32 : i32
    %1 = arith.extui %0 : i1 to i32
    %c0_i32_0 = arith.constant 0 : i32
    %2 = arith.cmpi ne, %1, %c0_i32_0 : i32
    scf.if %2 {
      %c0_54 = arith.constant 0 : index
      %c0_55 = arith.constant 0 : index
      %344 = vector.load %arg3[%c0_54, %c0_55] : memref<2x32xf32, #tpu.memory_space<vmem>>, vector<2x32xf32>
      %c0_56 = arith.constant 0 : index
      %c0_57 = arith.constant 0 : index
      %345 = vector.load %arg9[%c0_56, %c0_57] : memref<2x32xf32, #tpu.memory_space<vmem>>, vector<2x32xf32>
      tpu.vector_store %arg9[%c0_56, %c0_57], %344 {strides = array<i32>} : memref<2x32xf32, #tpu.memory_space<vmem>>, vector<2x32xf32>,
    } else {
    }
    %c0 = arith.constant 0 : index
    %c0_1 = arith.constant 0 : index
    %3 = vector.load %arg4[%c0, %c0_1] : memref<32x128xbf16, #tpu.memory_space<vmem>>, vector<32x128xbf16>
    %c0_2 = arith.constant 0 : index
    %c0_3 = arith.constant 0 : index
    %4 = vector.load %arg6[%c0_2, %c0_3] : memref<4x32xf32, #tpu.memory_space<vmem>>, vector<4x32xf32>
    %c0_4 = arith.constant 0 : index
    %c0_5 = arith.constant 0 : index
    %5 = vector.load %arg5[%c0_4, %c0_5] : memref<1x128xf32, #tpu.memory_space<vmem>>, vector<1x128xf32>
    %6 = vector.shape_cast %5 : vector<1x128xf32> to vector<1x128xf32>
    %7 = vector.broadcast %6 : vector<1x128xf32> to vector<2x128xf32>
    %c0_6 = arith.constant 0 : index
    %c0_7 = arith.constant 0 : index
    %8 = vector.load %arg7[%c0_6, %c0_7] : memref<1x32xf32, #tpu.memory_space<vmem>>, vector<1x32xf32>
    %9 = vector.shape_cast %8 : vector<1x32xf32> to vector<1x32xf32>
    %10 = vector.broadcast %9 : vector<1x32xf32> to vector<2x32xf32>
    %c0_8 = arith.constant 0 : index
    %c0_9 = arith.constant 0 : index
    %11 = vector.load %arg8[%c0_8, %c0_9] : memref<1x32xf32, #tpu.memory_space<vmem>>, vector<1x32xf32>
    %12 = vector.shape_cast %11 : vector<1x32xf32> to vector<1x32xf32>
    %13 = vector.broadcast %12 : vector<1x32xf32> to vector<2x32xf32>
    %c0_10 = arith.constant 0 : index
    %c0_11 = arith.constant 0 : index
    %14 = vector.load %arg9[%c0_10, %c0_11] : memref<2x32xf32, #tpu.memory_space<vmem>>, vector<2x32xf32>
    %cst = arith.constant 5.65685415 : f32
    %cst_12 = arith.constant 0.176776692 : f32
    %cst_13 = arith.constant 0.0322580636 : f32
    %cst_14 = arith.constant 9.99999997E-7 : f32
    %c0_i32_15 = arith.constant 0 : i32
    %15 = arith.index_cast %c0_i32_15 : i32 to index
    %c0_16 = arith.constant 0 : index
    %c0_17 = arith.constant 0 : index
    %16 = vector.load %arg2[%15, %c0_16, %c0_17] : memref<4x2x32xbf16, #tpu.memory_space<vmem>>, vector<1x2x32xbf16>
    %17 = vector.shape_cast %16 : vector<1x2x32xbf16> to vector<2x32xbf16>
    %18 = arith.extf %17 : vector<2x32xbf16> to vector<2x32xf32>
    %19 = vector.broadcast %cst : f32 to vector<2x32xf32>
    %20 = arith.mulf %18, %19 : vector<2x32xf32>
    %21 = arith.addf %14, %20 : vector<2x32xf32>
    %22 = arith.truncf %21 : vector<2x32xf32> to vector<2x32xbf16>
    %cst_18 = arith.constant dense<0.000000e+00> : vector<2x128xf32>
    %23 = tpu.matmul %22, %3, %cst_18 {dimension_numbers = #tpu.dot_dimension_numbers<[1], [0], [0], [1], [0, 0, 1, 1], [], []>} : vector<2x32xbf16>, vector<32x128xbf16>, vector<2x128xf32> -> vector<2x128xf32>
    %24 = arith.addf %23, %7 : vector<2x128xf32>
    %25 = vector.extract_strided_slice %24 {offsets = [0, 0], sizes = [2, 32], strides = [1, 1]} : vector<2x128xf32> to vector<2x32xf32>
    %26 = vector.extract_strided_slice %24 {offsets = [0, 32], sizes = [2, 32], strides = [1, 1]} : vector<2x128xf32> to vector<2x32xf32>
    %27 = vector.extract_strided_slice %24 {offsets = [0, 64], sizes = [2, 32], strides = [1, 1]} : vector<2x128xf32> to vector<2x32xf32>
    %28 = vector.extract_strided_slice %24 {offsets = [0, 96], sizes = [2, 4], strides = [1, 1]} : vector<2x128xf32> to vector<2x4xf32>
    %29 = vector.broadcast %cst_12 : f32 to vector<2x4xf32>
    %30 = arith.mulf %28, %29 : vector<2x4xf32>
    %31 = arith.mulf %25, %26 : vector<2x32xf32>
    %cst_19 = arith.constant dense<0.000000e+00> : vector<2xf32>
    %32 = vector.multi_reduction <add>, %31, %cst_19 [1] : vector<2x32xf32> to vector<2xf32>
    %33 = vector.shape_cast %32 : vector<2xf32> to vector<2x1xf32>
    %34 = vector.broadcast %cst_12 : f32 to vector<2x1xf32>
    %35 = arith.mulf %33, %34 : vector<2x1xf32>
    %cst_20 = arith.constant dense<0xFF800000> : vector<2xf32>
    %36 = vector.multi_reduction <maximumf>, %30, %cst_20 [1] : vector<2x4xf32> to vector<2xf32>
    %37 = vector.shape_cast %36 : vector<2xf32> to vector<2x1xf32>
    %38 = arith.maximumf %37, %35 : vector<2x1xf32>
    %39 = arith.subf %35, %38 : vector<2x1xf32>
    %40 = math.exp %39 : vector<2x1xf32>
    %41 = vector.broadcast %38 : vector<2x1xf32> to vector<2x4xf32>
    %42 = arith.subf %30, %41 : vector<2x4xf32>
    %43 = math.exp %42 : vector<2x4xf32>
    %cst_21 = arith.constant dense<0.000000e+00> : vector<2xf32>
    %44 = vector.multi_reduction <add>, %43, %cst_21 [1] : vector<2x4xf32> to vector<2xf32>
    %45 = vector.shape_cast %44 : vector<2xf32> to vector<2x1xf32>
    %46 = arith.addf %40, %45 : vector<2x1xf32>
    %47 = tpu.reciprocal %46 : vector<2x1xf32> -> vector<2x1xf32>
    %48 = arith.mulf %40, %47 : vector<2x1xf32>
    %49 = vector.broadcast %48 : vector<2x1xf32> to vector<2x32xf32>
    %50 = arith.mulf %49, %27 : vector<2x32xf32>
    %51 = vector.broadcast %47 : vector<2x1xf32> to vector<2x4xf32>
    %52 = arith.mulf %43, %51 : vector<2x4xf32>
    %53 = vector.extract_strided_slice %52 {offsets = [0, 0], sizes = [2, 1], strides = [1, 1]} : vector<2x4xf32> to vector<2x1xf32>
    %54 = vector.extract_strided_slice %4 {offsets = [0, 0], sizes = [1, 32], strides = [1, 1]} : vector<4x32xf32> to vector<1x32xf32>
    %55 = vector.broadcast %53 : vector<2x1xf32> to vector<2x32xf32>
    %56 = vector.broadcast %54 : vector<1x32xf32> to vector<2x32xf32>
    %57 = arith.mulf %55, %56 : vector<2x32xf32>
    %58 = arith.addf %50, %57 : vector<2x32xf32>
    %59 = vector.extract_strided_slice %52 {offsets = [0, 1], sizes = [2, 1], strides = [1, 1]} : vector<2x4xf32> to vector<2x1xf32>
    %60 = vector.extract_strided_slice %4 {offsets = [1, 0], sizes = [1, 32], strides = [1, 1]} : vector<4x32xf32> to vector<1x32xf32>
    %61 = vector.broadcast %59 : vector<2x1xf32> to vector<2x32xf32>
    %62 = vector.broadcast %60 : vector<1x32xf32> to vector<2x32xf32>
    %63 = arith.mulf %61, %62 : vector<2x32xf32>
    %64 = arith.addf %58, %63 : vector<2x32xf32>
    %65 = vector.extract_strided_slice %52 {offsets = [0, 2], sizes = [2, 1], strides = [1, 1]} : vector<2x4xf32> to vector<2x1xf32>
    %66 = vector.extract_strided_slice %4 {offsets = [2, 0], sizes = [1, 32], strides = [1, 1]} : vector<4x32xf32> to vector<1x32xf32>
    %67 = vector.broadcast %65 : vector<2x1xf32> to vector<2x32xf32>
    %68 = vector.broadcast %66 : vector<1x32xf32> to vector<2x32xf32>
    %69 = arith.mulf %67, %68 : vector<2x32xf32>
    %70 = arith.addf %64, %69 : vector<2x32xf32>
    %71 = vector.extract_strided_slice %52 {offsets = [0, 3], sizes = [2, 1], strides = [1, 1]} : vector<2x4xf32> to vector<2x1xf32>
    %72 = vector.extract_strided_slice %4 {offsets = [3, 0], sizes = [1, 32], strides = [1, 1]} : vector<4x32xf32> to vector<1x32xf32>
    %73 = vector.broadcast %71 : vector<2x1xf32> to vector<2x32xf32>
    %74 = vector.broadcast %72 : vector<1x32xf32> to vector<2x32xf32>
    %75 = arith.mulf %73, %74 : vector<2x32xf32>
    %76 = arith.addf %70, %75 : vector<2x32xf32>
    %77 = arith.addf %21, %76 : vector<2x32xf32>
    %cst_22 = arith.constant dense<0.000000e+00> : vector<2xf32>
    %78 = vector.multi_reduction <add>, %77, %cst_22 [1] : vector<2x32xf32> to vector<2xf32>
    %79 = vector.shape_cast %78 : vector<2xf32> to vector<2x1xf32>
    %cst_23 = arith.constant 3.200000e+01 : f32
    %80 = vector.broadcast %cst_23 : f32 to vector<2x1xf32>
    %81 = arith.divf %79, %80 : vector<2x1xf32>
    %82 = vector.broadcast %81 : vector<2x1xf32> to vector<2x32xf32>
    %83 = arith.subf %77, %82 : vector<2x32xf32>
    %84 = arith.mulf %83, %83 : vector<2x32xf32>
    %cst_24 = arith.constant dense<0.000000e+00> : vector<2xf32>
    %85 = vector.multi_reduction <add>, %84, %cst_24 [1] : vector<2x32xf32> to vector<2xf32>
    %86 = vector.shape_cast %85 : vector<2xf32> to vector<2x1xf32>
    %87 = vector.broadcast %cst_13 : f32 to vector<2x1xf32>
    %88 = arith.mulf %86, %87 : vector<2x1xf32>
    %89 = math.sqrt %88 : vector<2x1xf32>
    %90 = arith.mulf %10, %83 : vector<2x32xf32>
    %91 = vector.broadcast %cst_14 : f32 to vector<2x1xf32>
    %92 = arith.addf %89, %91 : vector<2x1xf32>
    %93 = tpu.reciprocal %92 : vector<2x1xf32> -> vector<2x1xf32>
    %94 = vector.broadcast %93 : vector<2x1xf32> to vector<2x32xf32>
    %95 = arith.mulf %90, %94 : vector<2x32xf32>
    %96 = arith.addf %95, %13 : vector<2x32xf32>
    %c1_i32 = arith.constant 1 : i32
    %97 = arith.index_cast %c1_i32 : i32 to index
    %c0_25 = arith.constant 0 : index
    %c0_26 = arith.constant 0 : index
    %98 = vector.load %arg2[%97, %c0_25, %c0_26] : memref<4x2x32xbf16, #tpu.memory_space<vmem>>, vector<1x2x32xbf16>
    %99 = vector.shape_cast %98 : vector<1x2x32xbf16> to vector<2x32xbf16>
    %100 = arith.extf %99 : vector<2x32xbf16> to vector<2x32xf32>
    %101 = vector.broadcast %cst : f32 to vector<2x32xf32>
    %102 = arith.mulf %100, %101 : vector<2x32xf32>
    %103 = arith.addf %96, %102 : vector<2x32xf32>
    %104 = arith.truncf %103 : vector<2x32xf32> to vector<2x32xbf16>
    %cst_27 = arith.constant dense<0.000000e+00> : vector<2x128xf32>
    %105 = tpu.matmul %104, %3, %cst_27 {dimension_numbers = #tpu.dot_dimension_numbers<[1], [0], [0], [1], [0, 0, 1, 1], [], []>} : vector<2x32xbf16>, vector<32x128xbf16>, vector<2x128xf32> -> vector<2x128xf32>
    %106 = arith.addf %105, %7 : vector<2x128xf32>
    %107 = vector.extract_strided_slice %106 {offsets = [0, 0], sizes = [2, 32], strides = [1, 1]} : vector<2x128xf32> to vector<2x32xf32>
    %108 = vector.extract_strided_slice %106 {offsets = [0, 32], sizes = [2, 32], strides = [1, 1]} : vector<2x128xf32> to vector<2x32xf32>
    %109 = vector.extract_strided_slice %106 {offsets = [0, 64], sizes = [2, 32], strides = [1, 1]} : vector<2x128xf32> to vector<2x32xf32>
    %110 = vector.extract_strided_slice %106 {offsets = [0, 96], sizes = [2, 4], strides = [1, 1]} : vector<2x128xf32> to vector<2x4xf32>
    %111 = vector.broadcast %cst_12 : f32 to vector<2x4xf32>
    %112 = arith.mulf %110, %111 : vector<2x4xf32>
    %113 = arith.mulf %107, %108 : vector<2x32xf32>
    %cst_28 = arith.constant dense<0.000000e+00> : vector<2xf32>
    %114 = vector.multi_reduction <add>, %113, %cst_28 [1] : vector<2x32xf32> to vector<2xf32>
    %115 = vector.shape_cast %114 : vector<2xf32> to vector<2x1xf32>
    %116 = vector.broadcast %cst_12 : f32 to vector<2x1xf32>
    %117 = arith.mulf %115, %116 : vector<2x1xf32>
    %cst_29 = arith.constant dense<0xFF800000> : vector<2xf32>
    %118 = vector.multi_reduction <maximumf>, %112, %cst_29 [1] : vector<2x4xf32> to vector<2xf32>
    %119 = vector.shape_cast %118 : vector<2xf32> to vector<2x1xf32>
    %120 = arith.maximumf %119, %117 : vector<2x1xf32>
    %121 = arith.subf %117, %120 : vector<2x1xf32>
    %122 = math.exp %121 : vector<2x1xf32>
    %123 = vector.broadcast %120 : vector<2x1xf32> to vector<2x4xf32>
    %124 = arith.subf %112, %123 : vector<2x4xf32>
    %125 = math.exp %124 : vector<2x4xf32>
    %cst_30 = arith.constant dense<0.000000e+00> : vector<2xf32>
    %126 = vector.multi_reduction <add>, %125, %cst_30 [1] : vector<2x4xf32> to vector<2xf32>
    %127 = vector.shape_cast %126 : vector<2xf32> to vector<2x1xf32>
    %128 = arith.addf %122, %127 : vector<2x1xf32>
    %129 = tpu.reciprocal %128 : vector<2x1xf32> -> vector<2x1xf32>
    %130 = arith.mulf %122, %129 : vector<2x1xf32>
    %131 = vector.broadcast %130 : vector<2x1xf32> to vector<2x32xf32>
    %132 = arith.mulf %131, %109 : vector<2x32xf32>
    %133 = vector.broadcast %129 : vector<2x1xf32> to vector<2x4xf32>
    %134 = arith.mulf %125, %133 : vector<2x4xf32>
    %135 = vector.extract_strided_slice %134 {offsets = [0, 0], sizes = [2, 1], strides = [1, 1]} : vector<2x4xf32> to vector<2x1xf32>
    %136 = vector.extract_strided_slice %4 {offsets = [0, 0], sizes = [1, 32], strides = [1, 1]} : vector<4x32xf32> to vector<1x32xf32>
    %137 = vector.broadcast %135 : vector<2x1xf32> to vector<2x32xf32>
    %138 = vector.broadcast %136 : vector<1x32xf32> to vector<2x32xf32>
    %139 = arith.mulf %137, %138 : vector<2x32xf32>
    %140 = arith.addf %132, %139 : vector<2x32xf32>
    %141 = vector.extract_strided_slice %134 {offsets = [0, 1], sizes = [2, 1], strides = [1, 1]} : vector<2x4xf32> to vector<2x1xf32>
    %142 = vector.extract_strided_slice %4 {offsets = [1, 0], sizes = [1, 32], strides = [1, 1]} : vector<4x32xf32> to vector<1x32xf32>
    %143 = vector.broadcast %141 : vector<2x1xf32> to vector<2x32xf32>
    %144 = vector.broadcast %142 : vector<1x32xf32> to vector<2x32xf32>
    %145 = arith.mulf %143, %144 : vector<2x32xf32>
    %146 = arith.addf %140, %145 : vector<2x32xf32>
    %147 = vector.extract_strided_slice %134 {offsets = [0, 2], sizes = [2, 1], strides = [1, 1]} : vector<2x4xf32> to vector<2x1xf32>
    %148 = vector.extract_strided_slice %4 {offsets = [2, 0], sizes = [1, 32], strides = [1, 1]} : vector<4x32xf32> to vector<1x32xf32>
    %149 = vector.broadcast %147 : vector<2x1xf32> to vector<2x32xf32>
    %150 = vector.broadcast %148 : vector<1x32xf32> to vector<2x32xf32>
    %151 = arith.mulf %149, %150 : vector<2x32xf32>
    %152 = arith.addf %146, %151 : vector<2x32xf32>
    %153 = vector.extract_strided_slice %134 {offsets = [0, 3], sizes = [2, 1], strides = [1, 1]} : vector<2x4xf32> to vector<2x1xf32>
    %154 = vector.extract_strided_slice %4 {offsets = [3, 0], sizes = [1, 32], strides = [1, 1]} : vector<4x32xf32> to vector<1x32xf32>
    %155 = vector.broadcast %153 : vector<2x1xf32> to vector<2x32xf32>
    %156 = vector.broadcast %154 : vector<1x32xf32> to vector<2x32xf32>
    %157 = arith.mulf %155, %156 : vector<2x32xf32>
    %158 = arith.addf %152, %157 : vector<2x32xf32>
    %159 = arith.addf %103, %158 : vector<2x32xf32>
    %cst_31 = arith.constant dense<0.000000e+00> : vector<2xf32>
    %160 = vector.multi_reduction <add>, %159, %cst_31 [1] : vector<2x32xf32> to vector<2xf32>
    %161 = vector.shape_cast %160 : vector<2xf32> to vector<2x1xf32>
    %cst_32 = arith.constant 3.200000e+01 : f32
    %162 = vector.broadcast %cst_32 : f32 to vector<2x1xf32>
    %163 = arith.divf %161, %162 : vector<2x1xf32>
    %164 = vector.broadcast %163 : vector<2x1xf32> to vector<2x32xf32>
    %165 = arith.subf %159, %164 : vector<2x32xf32>
    %166 = arith.mulf %165, %165 : vector<2x32xf32>
    %cst_33 = arith.constant dense<0.000000e+00> : vector<2xf32>
    %167 = vector.multi_reduction <add>, %166, %cst_33 [1] : vector<2x32xf32> to vector<2xf32>
    %168 = vector.shape_cast %167 : vector<2xf32> to vector<2x1xf32>
    %169 = vector.broadcast %cst_13 : f32 to vector<2x1xf32>
    %170 = arith.mulf %168, %169 : vector<2x1xf32>
    %171 = math.sqrt %170 : vector<2x1xf32>
    %172 = arith.mulf %10, %165 : vector<2x32xf32>
    %173 = vector.broadcast %cst_14 : f32 to vector<2x1xf32>
    %174 = arith.addf %171, %173 : vector<2x1xf32>
    %175 = tpu.reciprocal %174 : vector<2x1xf32> -> vector<2x1xf32>
    %176 = vector.broadcast %175 : vector<2x1xf32> to vector<2x32xf32>
    %177 = arith.mulf %172, %176 : vector<2x32xf32>
    %178 = arith.addf %177, %13 : vector<2x32xf32>
    %c2_i32 = arith.constant 2 : i32
    %179 = arith.index_cast %c2_i32 : i32 to index
    %c0_34 = arith.constant 0 : index
    %c0_35 = arith.constant 0 : index
    %180 = vector.load %arg2[%179, %c0_34, %c0_35] : memref<4x2x32xbf16, #tpu.memory_space<vmem>>, vector<1x2x32xbf16>
    %181 = vector.shape_cast %180 : vector<1x2x32xbf16> to vector<2x32xbf16>
    %182 = arith.extf %181 : vector<2x32xbf16> to vector<2x32xf32>
    %183 = vector.broadcast %cst : f32 to vector<2x32xf32>
    %184 = arith.mulf %182, %183 : vector<2x32xf32>
    %185 = arith.addf %178, %184 : vector<2x32xf32>
    %186 = arith.truncf %185 : vector<2x32xf32> to vector<2x32xbf16>
    %cst_36 = arith.constant dense<0.000000e+00> : vector<2x128xf32>
    %187 = tpu.matmul %186, %3, %cst_36 {dimension_numbers = #tpu.dot_dimension_numbers<[1], [0], [0], [1], [0, 0, 1, 1], [], []>} : vector<2x32xbf16>, vector<32x128xbf16>, vector<2x128xf32> -> vector<2x128xf32>
    %188 = arith.addf %187, %7 : vector<2x128xf32>
    %189 = vector.extract_strided_slice %188 {offsets = [0, 0], sizes = [2, 32], strides = [1, 1]} : vector<2x128xf32> to vector<2x32xf32>
    %190 = vector.extract_strided_slice %188 {offsets = [0, 32], sizes = [2, 32], strides = [1, 1]} : vector<2x128xf32> to vector<2x32xf32>
    %191 = vector.extract_strided_slice %188 {offsets = [0, 64], sizes = [2, 32], strides = [1, 1]} : vector<2x128xf32> to vector<2x32xf32>
    %192 = vector.extract_strided_slice %188 {offsets = [0, 96], sizes = [2, 4], strides = [1, 1]} : vector<2x128xf32> to vector<2x4xf32>
    %193 = vector.broadcast %cst_12 : f32 to vector<2x4xf32>
    %194 = arith.mulf %192, %193 : vector<2x4xf32>
    %195 = arith.mulf %189, %190 : vector<2x32xf32>
    %cst_37 = arith.constant dense<0.000000e+00> : vector<2xf32>
    %196 = vector.multi_reduction <add>, %195, %cst_37 [1] : vector<2x32xf32> to vector<2xf32>
    %197 = vector.shape_cast %196 : vector<2xf32> to vector<2x1xf32>
    %198 = vector.broadcast %cst_12 : f32 to vector<2x1xf32>
    %199 = arith.mulf %197, %198 : vector<2x1xf32>
    %cst_38 = arith.constant dense<0xFF800000> : vector<2xf32>
    %200 = vector.multi_reduction <maximumf>, %194, %cst_38 [1] : vector<2x4xf32> to vector<2xf32>
    %201 = vector.shape_cast %200 : vector<2xf32> to vector<2x1xf32>
    %202 = arith.maximumf %201, %199 : vector<2x1xf32>
    %203 = arith.subf %199, %202 : vector<2x1xf32>
    %204 = math.exp %203 : vector<2x1xf32>
    %205 = vector.broadcast %202 : vector<2x1xf32> to vector<2x4xf32>
    %206 = arith.subf %194, %205 : vector<2x4xf32>
    %207 = math.exp %206 : vector<2x4xf32>
    %cst_39 = arith.constant dense<0.000000e+00> : vector<2xf32>
    %208 = vector.multi_reduction <add>, %207, %cst_39 [1] : vector<2x4xf32> to vector<2xf32>
    %209 = vector.shape_cast %208 : vector<2xf32> to vector<2x1xf32>
    %210 = arith.addf %204, %209 : vector<2x1xf32>
    %211 = tpu.reciprocal %210 : vector<2x1xf32> -> vector<2x1xf32>
    %212 = arith.mulf %204, %211 : vector<2x1xf32>
    %213 = vector.broadcast %212 : vector<2x1xf32> to vector<2x32xf32>
    %214 = arith.mulf %213, %191 : vector<2x32xf32>
    %215 = vector.broadcast %211 : vector<2x1xf32> to vector<2x4xf32>
    %216 = arith.mulf %207, %215 : vector<2x4xf32>
    %217 = vector.extract_strided_slice %216 {offsets = [0, 0], sizes = [2, 1], strides = [1, 1]} : vector<2x4xf32> to vector<2x1xf32>
    %218 = vector.extract_strided_slice %4 {offsets = [0, 0], sizes = [1, 32], strides = [1, 1]} : vector<4x32xf32> to vector<1x32xf32>
    %219 = vector.broadcast %217 : vector<2x1xf32> to vector<2x32xf32>
    %220 = vector.broadcast %218 : vector<1x32xf32> to vector<2x32xf32>
    %221 = arith.mulf %219, %220 : vector<2x32xf32>
    %222 = arith.addf %214, %221 : vector<2x32xf32>
    %223 = vector.extract_strided_slice %216 {offsets = [0, 1], sizes = [2, 1], strides = [1, 1]} : vector<2x4xf32> to vector<2x1xf32>
    %224 = vector.extract_strided_slice %4 {offsets = [1, 0], sizes = [1, 32], strides = [1, 1]} : vector<4x32xf32> to vector<1x32xf32>
    %225 = vector.broadcast %223 : vector<2x1xf32> to vector<2x32xf32>
    %226 = vector.broadcast %224 : vector<1x32xf32> to vector<2x32xf32>
    %227 = arith.mulf %225, %226 : vector<2x32xf32>
    %228 = arith.addf %222, %227 : vector<2x32xf32>
    %229 = vector.extract_strided_slice %216 {offsets = [0, 2], sizes = [2, 1], strides = [1, 1]} : vector<2x4xf32> to vector<2x1xf32>
    %230 = vector.extract_strided_slice %4 {offsets = [2, 0], sizes = [1, 32], strides = [1, 1]} : vector<4x32xf32> to vector<1x32xf32>
    %231 = vector.broadcast %229 : vector<2x1xf32> to vector<2x32xf32>
    %232 = vector.broadcast %230 : vector<1x32xf32> to vector<2x32xf32>
    %233 = arith.mulf %231, %232 : vector<2x32xf32>
    %234 = arith.addf %228, %233 : vector<2x32xf32>
    %235 = vector.extract_strided_slice %216 {offsets = [0, 3], sizes = [2, 1], strides = [1, 1]} : vector<2x4xf32> to vector<2x1xf32>
    %236 = vector.extract_strided_slice %4 {offsets = [3, 0], sizes = [1, 32], strides = [1, 1]} : vector<4x32xf32> to vector<1x32xf32>
    %237 = vector.broadcast %235 : vector<2x1xf32> to vector<2x32xf32>
    %238 = vector.broadcast %236 : vector<1x32xf32> to vector<2x32xf32>
    %239 = arith.mulf %237, %238 : vector<2x32xf32>
    %240 = arith.addf %234, %239 : vector<2x32xf32>
    %241 = arith.addf %185, %240 : vector<2x32xf32>
    %cst_40 = arith.constant dense<0.000000e+00> : vector<2xf32>
    %242 = vector.multi_reduction <add>, %241, %cst_40 [1] : vector<2x32xf32> to vector<2xf32>
    %243 = vector.shape_cast %242 : vector<2xf32> to vector<2x1xf32>
    %cst_41 = arith.constant 3.200000e+01 : f32
    %244 = vector.broadcast %cst_41 : f32 to vector<2x1xf32>
    %245 = arith.divf %243, %244 : vector<2x1xf32>
    %246 = vector.broadcast %245 : vector<2x1xf32> to vector<2x32xf32>
    %247 = arith.subf %241, %246 : vector<2x32xf32>
    %248 = arith.mulf %247, %247 : vector<2x32xf32>
    %cst_42 = arith.constant dense<0.000000e+00> : vector<2xf32>
    %249 = vector.multi_reduction <add>, %248, %cst_42 [1] : vector<2x32xf32> to vector<2xf32>
    %250 = vector.shape_cast %249 : vector<2xf32> to vector<2x1xf32>
    %251 = vector.broadcast %cst_13 : f32 to vector<2x1xf32>
    %252 = arith.mulf %250, %251 : vector<2x1xf32>
    %253 = math.sqrt %252 : vector<2x1xf32>
    %254 = arith.mulf %10, %247 : vector<2x32xf32>
    %255 = vector.broadcast %cst_14 : f32 to vector<2x1xf32>
    %256 = arith.addf %253, %255 : vector<2x1xf32>
    %257 = tpu.reciprocal %256 : vector<2x1xf32> -> vector<2x1xf32>
    %258 = vector.broadcast %257 : vector<2x1xf32> to vector<2x32xf32>
    %259 = arith.mulf %254, %258 : vector<2x32xf32>
    %260 = arith.addf %259, %13 : vector<2x32xf32>
    %c3_i32 = arith.constant 3 : i32
    %261 = arith.index_cast %c3_i32 : i32 to index
    %c0_43 = arith.constant 0 : index
    %c0_44 = arith.constant 0 : index
    %262 = vector.load %arg2[%261, %c0_43, %c0_44] : memref<4x2x32xbf16, #tpu.memory_space<vmem>>, vector<1x2x32xbf16>
    %263 = vector.shape_cast %262 : vector<1x2x32xbf16> to vector<2x32xbf16>
    %264 = arith.extf %263 : vector<2x32xbf16> to vector<2x32xf32>
    %265 = vector.broadcast %cst : f32 to vector<2x32xf32>
    %266 = arith.mulf %264, %265 : vector<2x32xf32>
    %267 = arith.addf %260, %266 : vector<2x32xf32>
    %268 = arith.truncf %267 : vector<2x32xf32> to vector<2x32xbf16>
    %cst_45 = arith.constant dense<0.000000e+00> : vector<2x128xf32>
    %269 = tpu.matmul %268, %3, %cst_45 {dimension_numbers = #tpu.dot_dimension_numbers<[1], [0], [0], [1], [0, 0, 1, 1], [], []>} : vector<2x32xbf16>, vector<32x128xbf16>, vector<2x128xf32> -> vector<2x128xf32>
    %270 = arith.addf %269, %7 : vector<2x128xf32>
    %271 = vector.extract_strided_slice %270 {offsets = [0, 0], sizes = [2, 32], strides = [1, 1]} : vector<2x128xf32> to vector<2x32xf32>
    %272 = vector.extract_strided_slice %270 {offsets = [0, 32], sizes = [2, 32], strides = [1, 1]} : vector<2x128xf32> to vector<2x32xf32>
    %273 = vector.extract_strided_slice %270 {offsets = [0, 64], sizes = [2, 32], strides = [1, 1]} : vector<2x128xf32> to vector<2x32xf32>
    %274 = vector.extract_strided_slice %270 {offsets = [0, 96], sizes = [2, 4], strides = [1, 1]} : vector<2x128xf32> to vector<2x4xf32>
    %275 = vector.broadcast %cst_12 : f32 to vector<2x4xf32>
    %276 = arith.mulf %274, %275 : vector<2x4xf32>
    %277 = arith.mulf %271, %272 : vector<2x32xf32>
    %cst_46 = arith.constant dense<0.000000e+00> : vector<2xf32>
    %278 = vector.multi_reduction <add>, %277, %cst_46 [1] : vector<2x32xf32> to vector<2xf32>
    %279 = vector.shape_cast %278 : vector<2xf32> to vector<2x1xf32>
    %280 = vector.broadcast %cst_12 : f32 to vector<2x1xf32>
    %281 = arith.mulf %279, %280 : vector<2x1xf32>
    %cst_47 = arith.constant dense<0xFF800000> : vector<2xf32>
    %282 = vector.multi_reduction <maximumf>, %276, %cst_47 [1] : vector<2x4xf32> to vector<2xf32>
    %283 = vector.shape_cast %282 : vector<2xf32> to vector<2x1xf32>
    %284 = arith.maximumf %283, %281 : vector<2x1xf32>
    %285 = arith.subf %281, %284 : vector<2x1xf32>
    %286 = math.exp %285 : vector<2x1xf32>
    %287 = vector.broadcast %284 : vector<2x1xf32> to vector<2x4xf32>
    %288 = arith.subf %276, %287 : vector<2x4xf32>
    %289 = math.exp %288 : vector<2x4xf32>
    %cst_48 = arith.constant dense<0.000000e+00> : vector<2xf32>
    %290 = vector.multi_reduction <add>, %289, %cst_48 [1] : vector<2x4xf32> to vector<2xf32>
    %291 = vector.shape_cast %290 : vector<2xf32> to vector<2x1xf32>
    %292 = arith.addf %286, %291 : vector<2x1xf32>
    %293 = tpu.reciprocal %292 : vector<2x1xf32> -> vector<2x1xf32>
    %294 = arith.mulf %286, %293 : vector<2x1xf32>
    %295 = vector.broadcast %294 : vector<2x1xf32> to vector<2x32xf32>
    %296 = arith.mulf %295, %273 : vector<2x32xf32>
    %297 = vector.broadcast %293 : vector<2x1xf32> to vector<2x4xf32>
    %298 = arith.mulf %289, %297 : vector<2x4xf32>
    %299 = vector.extract_strided_slice %298 {offsets = [0, 0], sizes = [2, 1], strides = [1, 1]} : vector<2x4xf32> to vector<2x1xf32>
    %300 = vector.extract_strided_slice %4 {offsets = [0, 0], sizes = [1, 32], strides = [1, 1]} : vector<4x32xf32> to vector<1x32xf32>
    %301 = vector.broadcast %299 : vector<2x1xf32> to vector<2x32xf32>
    %302 = vector.broadcast %300 : vector<1x32xf32> to vector<2x32xf32>
    %303 = arith.mulf %301, %302 : vector<2x32xf32>
    %304 = arith.addf %296, %303 : vector<2x32xf32>
    %305 = vector.extract_strided_slice %298 {offsets = [0, 1], sizes = [2, 1], strides = [1, 1]} : vector<2x4xf32> to vector<2x1xf32>
    %306 = vector.extract_strided_slice %4 {offsets = [1, 0], sizes = [1, 32], strides = [1, 1]} : vector<4x32xf32> to vector<1x32xf32>
    %307 = vector.broadcast %305 : vector<2x1xf32> to vector<2x32xf32>
    %308 = vector.broadcast %306 : vector<1x32xf32> to vector<2x32xf32>
    %309 = arith.mulf %307, %308 : vector<2x32xf32>
    %310 = arith.addf %304, %309 : vector<2x32xf32>
    %311 = vector.extract_strided_slice %298 {offsets = [0, 2], sizes = [2, 1], strides = [1, 1]} : vector<2x4xf32> to vector<2x1xf32>
    %312 = vector.extract_strided_slice %4 {offsets = [2, 0], sizes = [1, 32], strides = [1, 1]} : vector<4x32xf32> to vector<1x32xf32>
    %313 = vector.broadcast %311 : vector<2x1xf32> to vector<2x32xf32>
    %314 = vector.broadcast %312 : vector<1x32xf32> to vector<2x32xf32>
    %315 = arith.mulf %313, %314 : vector<2x32xf32>
    %316 = arith.addf %310, %315 : vector<2x32xf32>
    %317 = vector.extract_strided_slice %298 {offsets = [0, 3], sizes = [2, 1], strides = [1, 1]} : vector<2x4xf32> to vector<2x1xf32>
    %318 = vector.extract_strided_slice %4 {offsets = [3, 0], sizes = [1, 32], strides = [1, 1]} : vector<4x32xf32> to vector<1x32xf32>
    %319 = vector.broadcast %317 : vector<2x1xf32> to vector<2x32xf32>
    %320 = vector.broadcast %318 : vector<1x32xf32> to vector<2x32xf32>
    %321 = arith.mulf %319, %320 : vector<2x32xf32>
    %322 = arith.addf %316, %321 : vector<2x32xf32>
    %323 = arith.addf %267, %322 : vector<2x32xf32>
    %cst_49 = arith.constant dense<0.000000e+00> : vector<2xf32>
    %324 = vector.multi_reduction <add>, %323, %cst_49 [1] : vector<2x32xf32> to vector<2xf32>
    %325 = vector.shape_cast %324 : vector<2xf32> to vector<2x1xf32>
    %cst_50 = arith.constant 3.200000e+01 : f32
    %326 = vector.broadcast %cst_50 : f32 to vector<2x1xf32>
    %327 = arith.divf %325, %326 : vector<2x1xf32>
    %328 = vector.broadcast %327 : vector<2x1xf32> to vector<2x32xf32>
    %329 = arith.subf %323, %328 : vector<2x32xf32>
    %330 = arith.mulf %329, %329 : vector<2x32xf32>
    %cst_51 = arith.constant dense<0.000000e+00> : vector<2xf32>
    %331 = vector.multi_reduction <add>, %330, %cst_51 [1] : vector<2x32xf32> to vector<2xf32>
    %332 = vector.shape_cast %331 : vector<2xf32> to vector<2x1xf32>
    %333 = vector.broadcast %cst_13 : f32 to vector<2x1xf32>
    %334 = arith.mulf %332, %333 : vector<2x1xf32>
    %335 = math.sqrt %334 : vector<2x1xf32>
    %336 = arith.mulf %10, %329 : vector<2x32xf32>
    %337 = vector.broadcast %cst_14 : f32 to vector<2x1xf32>
    %338 = arith.addf %335, %337 : vector<2x1xf32>
    %339 = tpu.reciprocal %338 : vector<2x1xf32> -> vector<2x1xf32>
    %340 = vector.broadcast %339 : vector<2x1xf32> to vector<2x32xf32>
    %341 = arith.mulf %336, %340 : vector<2x32xf32>
    %342 = arith.addf %341, %13 : vector<2x32xf32>
    %c4_i32 = arith.constant 4 : i32
    %c0_52 = arith.constant 0 : index
    %c0_53 = arith.constant 0 : index
    %343 = vector.load %arg9[%c0_52, %c0_53] : memref<2x32xf32, #tpu.memory_space<vmem>>, vector<2x32xf32>
    tpu.vector_store %arg9[%c0_52, %c0_53], %342 {strides = array<i32>} : memref<2x32xf32, #tpu.memory_space<vmem>>, vector<2x32xf32>,
    return
  }
  func.func @transform_0(%arg0: i32, %arg1: i32) -> (i32, i32, i32) {
    %c0_i32 = arith.constant 0 : i32
    %c0_i32_0 = arith.constant 0 : i32
    return %arg1, %arg0, %c0_i32 : i32, i32, i32
  }
  func.func @transform_1(%arg0: i32, %arg1: i32) -> (i32, i32) {
    %c0_i32 = arith.constant 0 : i32
    %c0_i32_0 = arith.constant 0 : i32
    return %arg0, %c0_i32 : i32, i32
  }
  func.func @transform_2(%arg0: i32, %arg1: i32) -> (i32, i32) {
    %c0_i32 = arith.constant 0 : i32
    %c0_i32_0 = arith.constant 0 : i32
    %c0_i32_1 = arith.constant 0 : i32
    return %c0_i32, %c0_i32_0 : i32, i32
  }
  func.func @transform_3(%arg0: i32, %arg1: i32) -> (i32, i32) {
    %c0_i32 = arith.constant 0 : i32
    %c0_i32_0 = arith.constant 0 : i32
    %c0_i32_1 = arith.constant 0 : i32
    return %c0_i32, %c0_i32_0 : i32, i32
  }
  func.func @transform_4(%arg0: i32, %arg1: i32) -> (i32, i32) {
    %c0_i32 = arith.constant 0 : i32
    %c0_i32_0 = arith.constant 0 : i32
    %c0_i32_1 = arith.constant 0 : i32
    return %c0_i32, %c0_i32_0 : i32, i32
  }
  func.func @transform_5(%arg0: i32, %arg1: i32) -> (i32, i32) {
    %c0_i32 = arith.constant 0 : i32
    %c0_i32_0 = arith.constant 0 : i32
    %c0_i32_1 = arith.constant 0 : i32
    return %c0_i32, %c0_i32_0 : i32, i32
  }
  func.func @transform_6(%arg0: i32, %arg1: i32) -> (i32, i32) {
    %c0_i32 = arith.constant 0 : i32
    %c0_i32_0 = arith.constant 0 : i32
    %c0_i32_1 = arith.constant 0 : i32
    return %c0_i32, %c0_i32_0 : i32, i32
  }
  func.func @transform_7(%arg0: i32, %arg1: i32) -> (i32, i32) {
    %c0_i32 = arith.constant 0 : i32
    %c0_i32_0 = arith.constant 0 : i32
    return %arg0, %c0_i32 : i32, i32
  }
}

</mosaic_0001>

<llo_original>
// kernel: tpu_custom_call.1
$region0: #{tpu_custom_call.1}
  #allocation0 [shape = 'u32[]', space=smem, size = 0x4, offset = 0x4, fixed_abs, tag = 'smem constant byte address 0x4 - core index']
  #allocation1 [shape = 'u32[144,128]{1,0:T(1,128)}', space=vmem, size = 0x12000, scoped, tag = 'internal scratch']
  %s0 = inlined_call_operand.hbm [shape: bf16[8,2,32], index: 0, kind: input, shape index: {}]
  %s1 = inlined_call_operand.hbm [shape: f32[2,32], index: 1, kind: input, shape index: {}]
  %s2 = inlined_call_operand.hbm [shape: bf16[32,128], index: 2, kind: input, shape index: {}]
  %s3 = inlined_call_operand.vmem [shape: f32[1,128], index: 3, kind: input, shape index: {}]
  %s4 = inlined_call_operand.vmem [shape: f32[4,32], index: 4, kind: input, shape index: {}]
  %s5 = inlined_call_operand.vmem [shape: f32[1,32], index: 5, kind: input, shape index: {}]
  %s6 = inlined_call_operand.vmem [shape: f32[1,32], index: 6, kind: input, shape index: {}]
  %s7 = inlined_call_operand.hbm [shape: f32[2,32], index: 7, kind: output, shape index: {}]
  %s8 = sld [smem:[#allocation0]]
  $region77: #{tpu_custom_call.1} parent=0
    _
  %s10 = ssub.s32 1, %s8
  %s11 = scalar_select 0, %s10, %s8
  $region1: #{tpu_custom_call.1} parent=0
    #allocation2 [shape = 'u8[4096]{0}', space=vmem, size = 0x1000, scoped, tag = 'input window, operand 0']
    #allocation3 [shape = 's32[2]{0}', space=sflag, size = 0x8, scoped, tag = 'scoped memory for tpu_custom_call.1']
    #allocation4 [shape = 's32[2]{0}', space=sflag, size = 0x8, scoped, tag = 'scoped memory for tpu_custom_call.1']
    #allocation5 [shape = 'u8[1024]{0}', space=vmem, size = 0x400, scoped, tag = 'input window, operand 1, single buffered']
    #allocation6 [shape = 's32[1]{0}', space=sflag, size = 0x4, scoped, tag = 'scoped memory for tpu_custom_call.1']
    #allocation7 [shape = 'u8[8192]{0}', space=vmem, size = 0x2000, scoped, tag = 'input window, operand 2, single buffered']
    #allocation8 [shape = 'u8[1024]{0}', space=vmem, size = 0x400, scoped, tag = 'output window, operand 0, single buffered']
    %12 = vsyncpa [#allocation3], 0
    %s13 = scalar_lea.sflag [#allocation3], 1
    %14 = vsyncpa %s13, 0
    %15 = vsyncpa [#allocation6], 0
    %16 = vsyncpa [#allocation4], 0
    loop: start=0, step=1, limit=4
    $region2: #{tpu_custom_call.1} parent=1 // loop_pre_header
      _
    $region3: #{tpu_custom_call.1} parent=1 // loop_header
      %s18 = sphi 0, %s22
      %p19 = scmp.ge.s32.totalorder %s18, 4
      %s25 = sphi 0, %s37
      %s26 = sphi 0, %s33
      %s27 = sphi 0, %s25
      %s28 = sphi 0, %s26
      %s29 = sphi 0, %s27
      %s30 = sphi 0, %s28
      %s42 = sphi 0, %s44
      %s45 = sphi 0, %s42
      %s46 = sphi 0, %s45
      %s62 = sphi 0, %s46
      %s68 = sphi 0, %s70
      %s71 = sphi 0, %s68
      %s72 = sphi 0, %s71
      %s88 = sphi 0, %s72
      %s92 = sphi 0, %s92
      %s94 = sphi 0, %s92
      %s95 = sphi 0, %s94
      %s109 = sphi 0, %s95
      %s113 = sphi 0, %s113
      %s115 = sphi 0, %s113
      %s116 = sphi 0, %s115
      %s130 = sphi 0, %s116
      %s134 = sphi 0, %s134
      %s136 = sphi 0, %s134
      %s137 = sphi 0, %s136
      %s151 = sphi 0, %s137
      %s155 = sphi 0, %s155
      %s157 = sphi 0, %s155
      %s158 = sphi 0, %s157
      %s172 = sphi 0, %s158
      %s176 = sphi 0, %s176
      %s178 = sphi 0, %s176
      %s179 = sphi 0, %s178
      %s193 = sphi 0, %s179
      %s199 = sphi 0, %s201
      %s202 = sphi 0, %s199
      %s203 = sphi 0, %s202
      %s219 = sphi 0, %s203
    $region4: #{tpu_custom_call.1} parent=1 // loop_header_branch
      %21 = sbr.rel (%p19) target = $region8
    $region5: #{tpu_custom_call.1} parent=1 // loop_body
      %s23 = ssub.s32 %s18, 1
      %s24 = ssub.s32 %s18, 2
      %s31 = sadd.s32 1, %s26
      %p32 = scmp.ge.s32.totalorder %s31, 2
      %s33 = scalar_select %p32, 0, %s31
      %s34 = sadd.s32 1, %s25
      %s35 = scalar_select %p32, %s34, %s25
      %p36 = scmp.ge.s32.totalorder %s35, 1
      %s37 = scalar_select %p36, 0, %s35
      %s38 = ssub.s32 %s26, %s33
      %s39 = ssub.s32 %s25, %s37
      %s40 = sor.u32 %s38, %s39
      %p41 = scmp.eq.s32.totalorder %s40, 0
      %s43 = sadd.s32 %s42, 1
      %s44 = scalar_select %p41, %s42, %s43
      %p47 = pneg %p41
      %p48 = scmp.eq.s32.totalorder %s18, 1
      %p49 = por %p47, %p48
      %p50 = scmp.ne.s32.totalorder %s42, %s45
      %p51 = scmp.eq.s32.totalorder %s18, 0
      %p52 = por %p50, %p51
      %p53 = scmp.ne.s32.totalorder %s42, %s45
      %p54 = scmp.eq.s32.totalorder %s23, 1
      %p55 = por %p53, %p54
      %p56 = scmp.ne.s32.totalorder %s45, %s46
      %p57 = scmp.eq.s32.totalorder %s23, 0
      %p58 = por %p56, %p57
      %p59 = scmp.ne.s32.totalorder %s45, %s46
      %p60 = scmp.eq.s32.totalorder %s24, 1
      %p61 = por %p59, %p60
      %p63 = scmp.ne.s32.totalorder %s46, %s62
      %p64 = scmp.eq.s32.totalorder %s24, 0
      %p65 = por %p63, %p64
      %s66 = ssub.s32 %s25, %s37
      %p67 = scmp.eq.s32.totalorder %s66, 0
      %s69 = sadd.s32 %s68, 1
      %s70 = scalar_select %p67, %s68, %s69
      %p73 = pneg %p67
      %p74 = scmp.eq.s32.totalorder %s18, 1
      %p75 = por %p73, %p74
      %p76 = scmp.ne.s32.totalorder %s68, %s71
      %p77 = scmp.eq.s32.totalorder %s18, 0
      %p78 = por %p76, %p77
      %p79 = scmp.ne.s32.totalorder %s68, %s71
      %p80 = scmp.eq.s32.totalorder %s23, 1
      %p81 = por %p79, %p80
      %p82 = scmp.ne.s32.totalorder %s71, %s72
      %p83 = scmp.eq.s32.totalorder %s23, 0
      %p84 = por %p82, %p83
      %p85 = scmp.ne.s32.totalorder %s71, %s72
      %p86 = scmp.eq.s32.totalorder %s24, 1
      %p87 = por %p85, %p86
      %p89 = scmp.ne.s32.totalorder %s72, %s88
      %p90 = scmp.eq.s32.totalorder %s24, 0
      %p91 = por %p89, %p90
      %s93 = sadd.s32 %s92, 1
      %p96 = scmp.eq.s32.totalorder %s18, 1
      %p97 = scmp.ne.s32.totalorder %s92, %s94
      %p98 = scmp.eq.s32.totalorder %s18, 0
      %p99 = por %p97, %p98
      %p100 = scmp.ne.s32.totalorder %s92, %s94
      %p101 = scmp.eq.s32.totalorder %s23, 1
      %p102 = por %p100, %p101
      %p103 = scmp.ne.s32.totalorder %s94, %s95
      %p104 = scmp.eq.s32.totalorder %s23, 0
      %p105 = por %p103, %p104
      %p106 = scmp.ne.s32.totalorder %s94, %s95
      %p107 = scmp.eq.s32.totalorder %s24, 1
      %p108 = por %p106, %p107
      %p110 = scmp.ne.s32.totalorder %s95, %s109
      %p111 = scmp.eq.s32.totalorder %s24, 0
      %p112 = por %p110, %p111
      %s114 = sadd.s32 %s113, 1
      %p117 = scmp.eq.s32.totalorder %s18, 1
      %p118 = scmp.ne.s32.totalorder %s113, %s115
      %p119 = scmp.eq.s32.totalorder %s18, 0
      %p120 = por %p118, %p119
      %p121 = scmp.ne.s32.totalorder %s113, %s115
      %p122 = scmp.eq.s32.totalorder %s23, 1
      %p123 = por %p121, %p122
      %p124 = scmp.ne.s32.totalorder %s115, %s116
      %p125 = scmp.eq.s32.totalorder %s23, 0
      %p126 = por %p124, %p125
      %p127 = scmp.ne.s32.totalorder %s115, %s116
      %p128 = scmp.eq.s32.totalorder %s24, 1
      %p129 = por %p127, %p128
      %p131 = scmp.ne.s32.totalorder %s116, %s130
      %p132 = scmp.eq.s32.totalorder %s24, 0
      %p133 = por %p131, %p132
      %s135 = sadd.s32 %s134, 1
      %p138 = scmp.eq.s32.totalorder %s18, 1
      %p139 = scmp.ne.s32.totalorder %s134, %s136
      %p140 = scmp.eq.s32.totalorder %s18, 0
      %p141 = por %p139, %p140
      %p142 = scmp.ne.s32.totalorder %s134, %s136
      %p143 = scmp.eq.s32.totalorder %s23, 1
      %p144 = por %p142, %p143
      %p145 = scmp.ne.s32.totalorder %s136, %s137
      %p146 = scmp.eq.s32.totalorder %s23, 0
      %p147 = por %p145, %p146
      %p148 = scmp.ne.s32.totalorder %s136, %s137
      %p149 = scmp.eq.s32.totalorder %s24, 1
      %p150 = por %p148, %p149
      %p152 = scmp.ne.s32.totalorder %s137, %s151
      %p153 = scmp.eq.s32.totalorder %s24, 0
      %p154 = por %p152, %p153
      %s156 = sadd.s32 %s155, 1
      %p159 = scmp.eq.s32.totalorder %s18, 1
      %p160 = scmp.ne.s32.totalorder %s155, %s157
      %p161 = scmp.eq.s32.totalorder %s18, 0
      %p162 = por %p160, %p161
      %p163 = scmp.ne.s32.totalorder %s155, %s157
      %p164 = scmp.eq.s32.totalorder %s23, 1
      %p165 = por %p163, %p164
      %p166 = scmp.ne.s32.totalorder %s157, %s158
      %p167 = scmp.eq.s32.totalorder %s23, 0
      %p168 = por %p166, %p167
      %p169 = scmp.ne.s32.totalorder %s157, %s158
      %p170 = scmp.eq.s32.totalorder %s24, 1
      %p171 = por %p169, %p170
      %p173 = scmp.ne.s32.totalorder %s158, %s172
      %p174 = scmp.eq.s32.totalorder %s24, 0
      %p175 = por %p173, %p174
      %s177 = sadd.s32 %s176, 1
      %p180 = scmp.eq.s32.totalorder %s18, 1
      %p181 = scmp.ne.s32.totalorder %s176, %s178
      %p182 = scmp.eq.s32.totalorder %s18, 0
      %p183 = por %p181, %p182
      %p184 = scmp.ne.s32.totalorder %s176, %s178
      %p185 = scmp.eq.s32.totalorder %s23, 1
      %p186 = por %p184, %p185
      %p187 = scmp.ne.s32.totalorder %s178, %s179
      %p188 = scmp.eq.s32.totalorder %s23, 0
      %p189 = por %p187, %p188
      %p190 = scmp.ne.s32.totalorder %s178, %s179
      %p191 = scmp.eq.s32.totalorder %s24, 1
      %p192 = por %p190, %p191
      %p194 = scmp.ne.s32.totalorder %s179, %s193
      %p195 = scmp.eq.s32.totalorder %s24, 0
      %p196 = por %p194, %p195
      %s197 = ssub.s32 %s25, %s37
      %p198 = scmp.eq.s32.totalorder %s197, 0
      %s200 = sadd.s32 %s199, 1
      %s201 = scalar_select %p198, %s199, %s200
      %p204 = pneg %p198
      %p205 = scmp.eq.s32.totalorder %s18, 1
      %p206 = por %p204, %p205
      %p207 = scmp.ne.s32.totalorder %s199, %s202
      %p208 = scmp.eq.s32.totalorder %s18, 0
      %p209 = por %p207, %p208
      %p210 = scmp.ne.s32.totalorder %s199, %s202
      %p211 = scmp.eq.s32.totalorder %s23, 1
      %p212 = por %p210, %p211
      %p213 = scmp.ne.s32.totalorder %s202, %s203
      %p214 = scmp.eq.s32.totalorder %s23, 0
      %p215 = por %p213, %p214
      %p216 = scmp.ne.s32.totalorder %s202, %s203
      %p217 = scmp.eq.s32.totalorder %s24, 1
      %p218 = por %p216, %p217
      %p220 = scmp.ne.s32.totalorder %s203, %s219
      %p221 = scmp.eq.s32.totalorder %s24, 0
      %p222 = por %p220, %p221
      %p223 = scmp.le.s32.totalorder 1, %s18
      %p224 = scmp.lt.s32.totalorder %s18, 3
      %p225 = pnand %p223, %p224
      %p226 = pneg %p225
      // Predicated region
      $region9: #{tpu_custom_call.1} parent=5 // pred_check
        _
      $region10: #{tpu_custom_call.1} parent=5 // pred_check_branch
        %228 = sbr.rel (%p225) target = $region12
      $region11: #{tpu_custom_call.1} parent=5 // pred_region
        %s229 = ssub.s32 %s18, 1
        // Predicated region
        $region13: #{tpu_custom_call.1} parent=11 // pred_check
          %p230 = pneg %p84
        $region14: #{tpu_custom_call.1} parent=11 // pred_check_branch
          %232 = sbr.rel (%p230) target = $region16
        $region15: #{tpu_custom_call.1} parent=11 // pred_region
          %s234 = ssub.s32 32, 32
          %235 = vsyncadd [#allocation6], %s234
          %s236 = smul.addr %s27, 32
          %s237 = scalar_lea.hbm %s1, %s236
          %s239 = sshll.u32 [#allocation5], 4
          %s240 = int_to_ptr.vmem [resolvable:$true] %s239
          %242 = dma.hbm_to_vmem [thread:$0]  %s237, 32, %s240, [#allocation6]
        $region16: #{tpu_custom_call.1} parent=11 // pred_fallthru
          _
        // Predicated region
        $region17: #{tpu_custom_call.1} parent=11 // pred_check
          %p243 = pneg %p105
        $region18: #{tpu_custom_call.1} parent=11 // pred_check_branch
          %245 = sbr.rel (%p243) target = $region20
        $region19: #{tpu_custom_call.1} parent=11 // pred_region
          %s247 = ssub.s32 256, 256
          %248 = vsyncadd [#allocation6], %s247
          %s249 = sshll.u32 [#allocation7], 4
          %s250 = int_to_ptr.vmem [resolvable:$true] %s249
          %255 = dma.hbm_to_vmem [thread:$0]  %s2, 256, %s250, [#allocation6], 64, 64, 4
        $region20: #{tpu_custom_call.1} parent=11 // pred_fallthru
          _
        // Predicated region
        $region21: #{tpu_custom_call.1} parent=11 // pred_check
          %p256 = pneg %p126
        $region22: #{tpu_custom_call.1} parent=11 // pred_check_branch
          %258 = sbr.rel (%p256) target = $region24
        $region23: #{tpu_custom_call.1} parent=11 // pred_region
          _
        $region24: #{tpu_custom_call.1} parent=11 // pred_fallthru
          _
        // Predicated region
        $region25: #{tpu_custom_call.1} parent=11 // pred_check
          %p259 = pneg %p147
        $region26: #{tpu_custom_call.1} parent=11 // pred_check_branch
          %261 = sbr.rel (%p259) target = $region28
        $region27: #{tpu_custom_call.1} parent=11 // pred_region
          _
        $region28: #{tpu_custom_call.1} parent=11 // pred_fallthru
          _
        // Predicated region
        $region29: #{tpu_custom_call.1} parent=11 // pred_check
          %p262 = pneg %p168
        $region30: #{tpu_custom_call.1} parent=11 // pred_check_branch
          %264 = sbr.rel (%p262) target = $region32
        $region31: #{tpu_custom_call.1} parent=11 // pred_region
          _
        $region32: #{tpu_custom_call.1} parent=11 // pred_fallthru
          _
        // Predicated region
        $region33: #{tpu_custom_call.1} parent=11 // pred_check
          %p265 = pneg %p189
        $region34: #{tpu_custom_call.1} parent=11 // pred_check_branch
          %267 = sbr.rel (%p265) target = $region36
        $region35: #{tpu_custom_call.1} parent=11 // pred_region
          _
        $region36: #{tpu_custom_call.1} parent=11 // pred_fallthru
          _
      $region12: #{tpu_custom_call.1} parent=5 // pred_fallthru
        _
      %p268 = scmp.lt.s32.totalorder %s18, 2
      // Predicated region
      $region37: #{tpu_custom_call.1} parent=5 // pred_check
        %p269 = pneg %p268
      $region38: #{tpu_custom_call.1} parent=5 // pred_check_branch
        %271 = sbr.rel (%p269) target = $region40
      $region39: #{tpu_custom_call.1} parent=5 // pred_region
        // Predicated region
        $region41: #{tpu_custom_call.1} parent=39 // pred_check
          %p272 = pneg %p52
        $region42: #{tpu_custom_call.1} parent=39 // pred_check_branch
          %274 = sbr.rel (%p272) target = $region44
        $region43: #{tpu_custom_call.1} parent=39 // pred_region
          %s275 = sand.u32 %s42, 1
          %s276 = scalar_lea.sflag [#allocation3], %s275
          %s277 = sand.u32 %s42, 1
          %s278 = smul.addr %s277, 4
          %s279 = scalar_lea.vmem [#allocation2], %s278
          %s280 = smul.u32 4, %s26
          %s282 = ssub.s32 64, 64
          %283 = vsyncadd %s276, %s282
          %s284 = sadd.s32 %s25, %s280
          %s285 = smul.addr %s284, 16
          %s286 = scalar_lea.hbm %s0, %s285
          %s287 = sshll.u32 %s279, 4
          %s288 = int_to_ptr.vmem [resolvable:$true] %s287
          %293 = dma.hbm_to_vmem [thread:$0]  %s286, 64, %s288, %s276, 16, 16, 1
        $region44: #{tpu_custom_call.1} parent=39 // pred_fallthru
          _
      $region40: #{tpu_custom_call.1} parent=5 // pred_fallthru
        _
      %p294 = scmp.le.s32.totalorder 1, %s18
      %p295 = scmp.lt.s32.totalorder %s18, 3
      %p296 = pnand %p294, %p295
      %p297 = pneg %p296
      // Predicated region
      $region45: #{tpu_custom_call.1} parent=5 // pred_check
        _
      $region46: #{tpu_custom_call.1} parent=5 // pred_check_branch
        %299 = sbr.rel (%p296) target = $region48
      $region47: #{tpu_custom_call.1} parent=5 // pred_region
        %s300 = ssub.s32 %s18, 1
        %s301 = sand.u32 %s45, 1
        %s302 = scalar_lea.sflag [#allocation3], %s301
        %s303 = sand.u32 %s45, 1
        %s304 = smul.addr %s303, 4
        %s305 = scalar_lea.vmem [#allocation2], %s304
        // Predicated region
        $region49: #{tpu_custom_call.1} parent=47 // pred_check
          %p306 = pneg %p58
        $region50: #{tpu_custom_call.1} parent=47 // pred_check_branch
          %308 = sbr.rel (%p306) target = $region52
        $region51: #{tpu_custom_call.1} parent=47 // pred_region
          %309 = dma.done %s302, 64
        $region52: #{tpu_custom_call.1} parent=47 // pred_fallthru
          _
        // Predicated region
        $region53: #{tpu_custom_call.1} parent=47 // pred_check
          %p310 = pneg %p84
        $region54: #{tpu_custom_call.1} parent=47 // pred_check_branch
          %312 = sbr.rel (%p310) target = $region56
        $region55: #{tpu_custom_call.1} parent=47 // pred_region
          %313 = dma.done [#allocation6], 32
        $region56: #{tpu_custom_call.1} parent=47 // pred_fallthru
          _
        // Predicated region
        $region57: #{tpu_custom_call.1} parent=47 // pred_check
          %p314 = pneg %p105
        $region58: #{tpu_custom_call.1} parent=47 // pred_check_branch
          %316 = sbr.rel (%p314) target = $region60
        $region59: #{tpu_custom_call.1} parent=47 // pred_region
          %317 = dma.done [#allocation6], 256
        $region60: #{tpu_custom_call.1} parent=47 // pred_fallthru
          _
        %s318 = sand.u32 %s45, 1
        %s319 = scalar_lea.sflag [#allocation3], %s318
        %s320 = sand.u32 %s45, 1
        %s321 = smul.addr %s320, 4
        %s322 = scalar_lea.vmem [#allocation2], %s321
        %p323 = pneg %p58
        %p324 = pneg %p55
        %p325 = pneg %p84
        %p326 = pneg %p81
        %p327 = pneg %p105
        %p328 = pneg %p102
        %p329 = pneg %p126
        %p330 = pneg %p123
        %p331 = pneg %p147
        %p332 = pneg %p144
        %p333 = pneg %p168
        %p334 = pneg %p165
        %p335 = pneg %p189
        %p336 = pneg %p186
        %p337 = pneg %p215
        %p338 = pneg %p212
        %s339 = smul.u32 4, %s28
        %p341 = scmp.eq.s32.totalorder %s28, 0
        // Predicated region
        $region61: #{tpu_custom_call.1} parent=47 // pred_check
          %p342 = pneg %p341
        $region62: #{tpu_custom_call.1} parent=47 // pred_check_branch
          %344 = sbr.rel (%p342) target = $region64
        $region63: #{tpu_custom_call.1} parent=47 // pred_region
          %v345 = vld [vmem:[#allocation5] sm:$0x3]
          %vm346 = vcmask 254976
          %347 = vst.msk [vmem:[#allocation8] sm:$0x3] %vm346, %v345
        $region64: #{tpu_custom_call.1} parent=47 // pred_fallthru
          _
        %v348 = vld [vmem:[#allocation7] sm:$0xf]
        %v349 = vld [vmem:[#allocation7 + $0x4] sm:$0xf]
        %v350 = vld [vmem:[#allocation7 + $0x8] sm:$0xf]
        %v351 = vld [vmem:[#allocation7 + $0xc] sm:$0xf]
        %v352 = vld [vmem:[%s4] sm:$0xf]
        %v353 = vld [vmem:[%s3] sm:$0x1]
        %v355 = vlaneseq
        %v356 = vshrl.u32 %v355, 7
        %v357 = vsub.s32 0, %v356
        %v358 = vrot.slane %v353, %v357
        %v360 = vld [vmem:[%s5] sm:$0x1]
        %v362 = vlaneseq
        %v363 = vshrl.u32 %v362, 7
        %v364 = vsub.s32 0, %v363
        %v365 = vrot.slane %v360, %v364
        %v367 = vld [vmem:[%s6] sm:$0x1]
        %v369 = vlaneseq
        %v370 = vshrl.u32 %v369, 7
        %v371 = vsub.s32 0, %v370
        %v372 = vrot.slane %v367, %v371
        %v374 = vld [vmem:[#allocation8] sm:$0x3]
        %v375 = vld [vmem:[%s305] sm:$0x1]
        %v376 = vunpack.c.l.bf16 %v375
        %v377 = vmul.f32 %v376, 5.656854
        %v378 = vadd.f32 %v374, %v377
        %v379 = vpack.c.bf16 %v378, %v378
        %v384 = vunpack.c.l.b16 %v348
        %v385 = vunpack.c.l.b16 %v349
        %v386 = vunpack.c.l.b16 %v350
        %v387 = vunpack.c.l.b16 %v351
        %v388 = vpack.c.b16 %v385, %v384
        %v389 = vpack.c.b16 %v387, %v386
        %vm392 = vcmask 261120
        %v394 = vsel %vm392, %v379, 0
        %396 = vmatprep.subr.bf16.mxu0 0
        %397 = vmatpush1.bf16.msra.mxu0 0
        %398 = vmatprep.subr.bf16.mxu0 0
        %399 = vmatpush1.bf16.msra.mxu0 0
        %400 = vmatprep.subr.bf16.mxu0 0
        %401 = vmatpush1.bf16.msra.mxu0 0
        %402 = vmatprep.subr.bf16.mxu0 0
        %403 = vmatpush1.bf16.msra.mxu0 0
        %404 = vmatprep.subr.bf16.mxu0 0
        %405 = vmatpush1.bf16.msra.mxu0 0
        %406 = vmatprep.subr.bf16.mxu0 0
        %407 = vmatpush1.bf16.msra.mxu0 0
        %408 = vmatprep.subr.bf16.mxu0 0
        %409 = vmatpush1.bf16.msra.mxu0 %v389
        %410 = vmatprep.subr.bf16.mxu0 0
        %411 = vmatpush1.bf16.msra.mxu0 %v388
        %412 = vmatprep.subr.bf16.mxu0 0
        %413 = vmatpush2.bf16.msra.mxu0 0
        %414 = vmatprep.subr.bf16.mxu0 0
        %415 = vmatpush2.bf16.msra.mxu0 0
        %416 = vmatprep.subr.bf16.mxu0 0
        %417 = vmatpush2.bf16.msra.mxu0 0
        %418 = vmatprep.subr.bf16.mxu0 0
        %419 = vmatpush2.bf16.msra.mxu0 0
        %420 = vmatprep.subr.bf16.mxu0 0
        %421 = vmatpush2.bf16.msra.mxu0 0
        %422 = vmatprep.subr.bf16.mxu0 0
        %423 = vmatpush2.bf16.msra.mxu0 0
        %424 = vmatprep.subr.bf16.mxu0 0
        %425 = vmatpush2.bf16.msra.mxu0 0
        %426 = vmatprep.subr.bf16.mxu0 0
        %427 = vmatpush2.bf16.msra.mxu0 0
        %428 = vmatprep.mubr.bf16.mxu0 0
        %429 = vmatmul.mubr.bf16.gmra.mxu0 %v394
        %v430 = vpop.f32.mrf.mxu0
        %v431 = vadd.f32 %v358, %v430
        %v432 = vpop.f32.mrf.mxu0
        %v433 = vpop.f32.mrf.mxu0
        %v434 = vpop.f32.mrf.mxu0
        %435 = vdwg.mxu0
        %v436 = vmul.f32 %v431, 0.17677669
        %438 = vrot.lane.b32.xlu0 %v431, 96
        %v439 = vpop.permute.xlu0 %438
        %v441 = vmul.f32 %v431, %v439
        %vm442 = vcmask 254976
        %v443 = vsel %vm442, %v441, 0.0
        %444 = vadd.xlane.f32.xlu0 %v443
        %v445 = vpop.xlane.xlu0 %444
        %v446 = vmul.f32 %v445, 0.17677669
        %vm447 = vcmask 812800
        %v448 = vsel %vm447, %v436, -inf
        %449 = vmax.xlane.f32.xlu0 %v448
        %v450 = vpop.xlane.xlu0 %449
        %v451 = vmax.f32 %v450, %v446
        %v452 = vsub.f32 %v446, %v451
        %v453 = vmul.f32 %v452, 1.442695
        %v454 = vpow.pop %v453
        %v455 = vsub.f32 %v436, %v451
        %v456 = vmul.f32 %v455, 1.442695
        %v457 = vpow.pop %v456
        %459 = vrot.lane.b32.xlu0 %v457, 32
        %v460 = vpop.permute.xlu0 %459
        %vm462 = vcmask 25600
        %v463 = vsel %vm462, %v460, 0.0
        %464 = vadd.xlane.f32.xlu0 %v463
        %v465 = vpop.xlane.xlu0 %464
        %v466 = vadd.f32 %v454, %v465
        %v467 = vrcp.pop %v466
        %v468 = vmul.f32 %v454, %v467
        %v469 = vmul.f32 %v468, %v431
        %v470 = vmul.f32 %v457, %v467
        %472 = vset.pattern.permute.xlu0 96
        %473 = vperm.xlu0 %472, %v470
        %v474 = vpop.permute.xlu0 %473
        %v476 = vlaneseq
        %v477 = vshrl.u32 %v476, 7
        %v478 = vsub.s32 0, %v477
        %v479 = vrot.slane %v352, %v478
        %v480 = vmul.f32 %v474, %v479
        %482 = vrot.lane.b32.xlu0 %v480, 64
        %v483 = vpop.permute.xlu0 %482
        %v485 = vadd.f32 %v469, %v483
        %486 = vset.pattern.permute.xlu0 97
        %487 = vperm.xlu0 %486, %v470
        %v488 = vpop.permute.xlu0 %487
        %v490 = vlaneseq
        %v491 = vshrl.u32 %v490, 7
        %v492 = vsub.s32 1, %v491
        %v493 = vrot.slane %v352, %v492
        %v494 = vmul.f32 %v488, %v493
        %496 = vrot.lane.b32.xlu0 %v494, 64
        %v497 = vpop.permute.xlu0 %496
        %v499 = vadd.f32 %v485, %v497
        %500 = vset.pattern.permute.xlu0 98
        %501 = vperm.xlu0 %500, %v470
        %v502 = vpop.permute.xlu0 %501
        %v504 = vlaneseq
        %v505 = vshrl.u32 %v504, 7
        %v506 = vsub.s32 2, %v505
        %v507 = vrot.slane %v352, %v506
        %v508 = vmul.f32 %v502, %v507
        %510 = vrot.lane.b32.xlu0 %v508, 64
        %v511 = vpop.permute.xlu0 %510
        %v513 = vadd.f32 %v499, %v511
        %514 = vset.pattern.permute.xlu0 99
        %515 = vperm.xlu0 %514, %v470
        %v516 = vpop.permute.xlu0 %515
        %v518 = vlaneseq
        %v519 = vshrl.u32 %v518, 7
        %v520 = vsub.s32 3, %v519
        %v521 = vrot.slane %v352, %v520
        %v522 = vmul.f32 %v516, %v521
        %524 = vrot.lane.b32.xlu0 %v522, 64
        %v525 = vpop.permute.xlu0 %524
        %v527 = vadd.f32 %v513, %v525
        %529 = vrot.lane.b32.xlu0 %v527, 64
        %v530 = vpop.permute.xlu0 %529
        %v532 = vadd.f32 %v378, %v530
        %v533 = vsel %vm442, %v532, 0.0
        %534 = vadd.xlane.f32.xlu0 %v533
        %v535 = vpop.xlane.xlu0 %534
        %v536 = vrcp.pop 32.0
        %v537 = vmul.f32 %v535, %v536
        %v538 = vsub.f32 %v532, %v537
        %v539 = vmul.f32 %v538, %v538
        %v540 = vsel %vm442, %v539, 0.0
        %541 = vadd.xlane.f32.xlu0 %v540
        %v542 = vpop.xlane.xlu0 %541
        %v543 = vmul.f32 %v542, 0.032258064
        %v544 = vrsqrt.pop %v543
        %v545 = vmul.f32 %v543, %v544
        %vm546 = vcmp.eq.f32.partialorder %v543, inf
        %v547 = vsel %vm546, %v543, %v545
        %vm548 = vcmp.eq.f32.partialorder %v543, 0.0
        %v549 = vand.u32 %v543, 2147483648
        %v550 = vsel %vm548, %v549, %v547
        %v551 = vmul.f32 %v365, %v538
        %v552 = vadd.f32 %v550, 1e-06
        %v553 = vrcp.pop %v552
        %v554 = vmul.f32 %v551, %v553
        %v555 = vadd.f32 %v554, %v372
        %s556 = scalar_lea.vmem %s305, 1 [#allocation2]
        %v557 = vld [vmem:[%s556] sm:$0x1]
        %v558 = vunpack.c.l.bf16 %v557
        %v559 = vmul.f32 %v558, 5.656854
        %v560 = vadd.f32 %v555, %v559
        %v561 = vpack.c.bf16 %v560, %v560
        %v563 = vsel %vm392, %v561, 0
        %565 = vmatprep.subr.bf16.mxu0 0
        %566 = vmatpush1.bf16.msra.mxu0 0
        %567 = vmatprep.subr.bf16.mxu0 0
        %568 = vmatpush1.bf16.msra.mxu0 0
        %569 = vmatprep.subr.bf16.mxu0 0
        %570 = vmatpush1.bf16.msra.mxu0 0
        %571 = vmatprep.subr.bf16.mxu0 0
        %572 = vmatpush1.bf16.msra.mxu0 0
        %573 = vmatprep.subr.bf16.mxu0 0
        %574 = vmatpush1.bf16.msra.mxu0 0
        %575 = vmatprep.subr.bf16.mxu0 0
        %576 = vmatpush1.bf16.msra.mxu0 0
        %577 = vmatprep.subr.bf16.mxu0 0
        %578 = vmatpush1.bf16.msra.mxu0 %v389
        %579 = vmatprep.subr.bf16.mxu0 0
        %580 = vmatpush1.bf16.msra.mxu0 %v388
        %581 = vmatprep.subr.bf16.mxu0 0
        %582 = vmatpush2.bf16.msra.mxu0 0
        %583 = vmatprep.subr.bf16.mxu0 0
        %584 = vmatpush2.bf16.msra.mxu0 0
        %585 = vmatprep.subr.bf16.mxu0 0
        %586 = vmatpush2.bf16.msra.mxu0 0
        %587 = vmatprep.subr.bf16.mxu0 0
        %588 = vmatpush2.bf16.msra.mxu0 0
        %589 = vmatprep.subr.bf16.mxu0 0
        %590 = vmatpush2.bf16.msra.mxu0 0
        %591 = vmatprep.subr.bf16.mxu0 0
        %592 = vmatpush2.bf16.msra.mxu0 0
        %593 = vmatprep.subr.bf16.mxu0 0
        %594 = vmatpush2.bf16.msra.mxu0 0
        %595 = vmatprep.subr.bf16.mxu0 0
        %596 = vmatpush2.bf16.msra.mxu0 0
        %597 = vmatprep.mubr.bf16.mxu0 0
        %598 = vmatmul.mubr.bf16.gmra.mxu0 %v563
        %v599 = vpop.f32.mrf.mxu0
        %v600 = vadd.f32 %v358, %v599
        %v601 = vpop.f32.mrf.mxu0
        %v602 = vpop.f32.mrf.mxu0
        %v603 = vpop.f32.mrf.mxu0
        %604 = vdwg.mxu0
        %v605 = vmul.f32 %v600, 0.17677669
        %607 = vrot.lane.b32.xlu0 %v600, 96
        %v608 = vpop.permute.xlu0 %607
        %v610 = vmul.f32 %v600, %v608
        %v611 = vsel %vm442, %v610, 0.0
        %612 = vadd.xlane.f32.xlu0 %v611
        %v613 = vpop.xlane.xlu0 %612
        %v614 = vmul.f32 %v613, 0.17677669
        %v615 = vsel %vm447, %v605, -inf
        %616 = vmax.xlane.f32.xlu0 %v615
        %v617 = vpop.xlane.xlu0 %616
        %v618 = vmax.f32 %v617, %v614
        %v619 = vsub.f32 %v614, %v618
        %v620 = vmul.f32 %v619, 1.442695
        %v621 = vpow.pop %v620
        %v622 = vsub.f32 %v605, %v618
        %v623 = vmul.f32 %v622, 1.442695
        %v624 = vpow.pop %v623
        %626 = vrot.lane.b32.xlu0 %v624, 32
        %v627 = vpop.permute.xlu0 %626
        %v629 = vsel %vm462, %v627, 0.0
        %630 = vadd.xlane.f32.xlu0 %v629
        %v631 = vpop.xlane.xlu0 %630
        %v632 = vadd.f32 %v621, %v631
        %v633 = vrcp.pop %v632
        %v634 = vmul.f32 %v621, %v633
        %v635 = vmul.f32 %v634, %v600
        %v636 = vmul.f32 %v624, %v633
        %638 = vset.pattern.permute.xlu0 96
        %639 = vperm.xlu0 %638, %v636
        %v640 = vpop.permute.xlu0 %639
        %v642 = vmul.f32 %v640, %v479
        %644 = vrot.lane.b32.xlu0 %v642, 64
        %v645 = vpop.permute.xlu0 %644
        %v647 = vadd.f32 %v635, %v645
        %648 = vset.pattern.permute.xlu0 97
        %649 = vperm.xlu0 %648, %v636
        %v650 = vpop.permute.xlu0 %649
        %v652 = vmul.f32 %v650, %v493
        %654 = vrot.lane.b32.xlu0 %v652, 64
        %v655 = vpop.permute.xlu0 %654
        %v657 = vadd.f32 %v647, %v655
        %658 = vset.pattern.permute.xlu0 98
        %659 = vperm.xlu0 %658, %v636
        %v660 = vpop.permute.xlu0 %659
        %v662 = vmul.f32 %v660, %v507
        %664 = vrot.lane.b32.xlu0 %v662, 64
        %v665 = vpop.permute.xlu0 %664
        %v667 = vadd.f32 %v657, %v665
        %668 = vset.pattern.permute.xlu0 99
        %669 = vperm.xlu0 %668, %v636
        %v670 = vpop.permute.xlu0 %669
        %v672 = vmul.f32 %v670, %v521
        %674 = vrot.lane.b32.xlu0 %v672, 64
        %v675 = vpop.permute.xlu0 %674
        %v677 = vadd.f32 %v667, %v675
        %679 = vrot.lane.b32.xlu0 %v677, 64
        %v680 = vpop.permute.xlu0 %679
        %v682 = vadd.f32 %v560, %v680
        %v683 = vsel %vm442, %v682, 0.0
        %684 = vadd.xlane.f32.xlu0 %v683
        %v685 = vpop.xlane.xlu0 %684
        %v686 = vmul.f32 %v685, %v536
        %v687 = vsub.f32 %v682, %v686
        %v688 = vmul.f32 %v687, %v687
        %v689 = vsel %vm442, %v688, 0.0
        %690 = vadd.xlane.f32.xlu0 %v689
        %v691 = vpop.xlane.xlu0 %690
        %v692 = vmul.f32 %v691, 0.032258064
        %v693 = vrsqrt.pop %v692
        %v694 = vmul.f32 %v692, %v693
        %vm695 = vcmp.eq.f32.partialorder %v692, inf
        %v696 = vsel %vm695, %v692, %v694
        %vm697 = vcmp.eq.f32.partialorder %v692, 0.0
        %v698 = vand.u32 %v692, 2147483648
        %v699 = vsel %vm697, %v698, %v696
        %v700 = vmul.f32 %v365, %v687
        %v701 = vadd.f32 %v699, 1e-06
        %v702 = vrcp.pop %v701
        %v703 = vmul.f32 %v700, %v702
        %v704 = vadd.f32 %v703, %v372
        %s705 = scalar_lea.vmem %s305, 2 [#allocation2]
        %v706 = vld [vmem:[%s705] sm:$0x1]
        %v707 = vunpack.c.l.bf16 %v706
        %v708 = vmul.f32 %v707, 5.656854
        %v709 = vadd.f32 %v704, %v708
        %v710 = vpack.c.bf16 %v709, %v709
        %v712 = vsel %vm392, %v710, 0
        %714 = vmatprep.subr.bf16.mxu0 0
        %715 = vmatpush1.bf16.msra.mxu0 0
        %716 = vmatprep.subr.bf16.mxu0 0
        %717 = vmatpush1.bf16.msra.mxu0 0
        %718 = vmatprep.subr.bf16.mxu0 0
        %719 = vmatpush1.bf16.msra.mxu0 0
        %720 = vmatprep.subr.bf16.mxu0 0
        %721 = vmatpush1.bf16.msra.mxu0 0
        %722 = vmatprep.subr.bf16.mxu0 0
        %723 = vmatpush1.bf16.msra.mxu0 0
        %724 = vmatprep.subr.bf16.mxu0 0
        %725 = vmatpush1.bf16.msra.mxu0 0
        %726 = vmatprep.subr.bf16.mxu0 0
        %727 = vmatpush1.bf16.msra.mxu0 %v389
        %728 = vmatprep.subr.bf16.mxu0 0
        %729 = vmatpush1.bf16.msra.mxu0 %v388
        %730 = vmatprep.subr.bf16.mxu0 0
        %731 = vmatpush2.bf16.msra.mxu0 0
        %732 = vmatprep.subr.bf16.mxu0 0
        %733 = vmatpush2.bf16.msra.mxu0 0
        %734 = vmatprep.subr.bf16.mxu0 0
        %735 = vmatpush2.bf16.msra.mxu0 0
        %736 = vmatprep.subr.bf16.mxu0 0
        %737 = vmatpush2.bf16.msra.mxu0 0
        %738 = vmatprep.subr.bf16.mxu0 0
        %739 = vmatpush2.bf16.msra.mxu0 0
        %740 = vmatprep.subr.bf16.mxu0 0
        %741 = vmatpush2.bf16.msra.mxu0 0
        %742 = vmatprep.subr.bf16.mxu0 0
        %743 = vmatpush2.bf16.msra.mxu0 0
        %744 = vmatprep.subr.bf16.mxu0 0
        %745 = vmatpush2.bf16.msra.mxu0 0
        %746 = vmatprep.mubr.bf16.mxu0 0
        %747 = vmatmul.mubr.bf16.gmra.mxu0 %v712
        %v748 = vpop.f32.mrf.mxu0
        %v749 = vadd.f32 %v358, %v748
        %v750 = vpop.f32.mrf.mxu0
        %v751 = vpop.f32.mrf.mxu0
        %v752 = vpop.f32.mrf.mxu0
        %753 = vdwg.mxu0
        %v754 = vmul.f32 %v749, 0.17677669
        %756 = vrot.lane.b32.xlu0 %v749, 96
        %v757 = vpop.permute.xlu0 %756
        %v759 = vmul.f32 %v749, %v757
        %v760 = vsel %vm442, %v759, 0.0
        %761 = vadd.xlane.f32.xlu0 %v760
        %v762 = vpop.xlane.xlu0 %761
        %v763 = vmul.f32 %v762, 0.17677669
        %v764 = vsel %vm447, %v754, -inf
        %765 = vmax.xlane.f32.xlu0 %v764
        %v766 = vpop.xlane.xlu0 %765
        %v767 = vmax.f32 %v766, %v763
        %v768 = vsub.f32 %v763, %v767
        %v769 = vmul.f32 %v768, 1.442695
        %v770 = vpow.pop %v769
        %v771 = vsub.f32 %v754, %v767
        %v772 = vmul.f32 %v771, 1.442695
        %v773 = vpow.pop %v772
        %775 = vrot.lane.b32.xlu0 %v773, 32
        %v776 = vpop.permute.xlu0 %775
        %v778 = vsel %vm462, %v776, 0.0
        %779 = vadd.xlane.f32.xlu0 %v778
        %v780 = vpop.xlane.xlu0 %779
        %v781 = vadd.f32 %v770, %v780
        %v782 = vrcp.pop %v781
        %v783 = vmul.f32 %v770, %v782
        %v784 = vmul.f32 %v783, %v749
        %v785 = vmul.f32 %v773, %v782
        %787 = vset.pattern.permute.xlu0 96
        %788 = vperm.xlu0 %787, %v785
        %v789 = vpop.permute.xlu0 %788
        %v791 = vmul.f32 %v789, %v479
        %793 = vrot.lane.b32.xlu0 %v791, 64
        %v794 = vpop.permute.xlu0 %793
        %v796 = vadd.f32 %v784, %v794
        %797 = vset.pattern.permute.xlu0 97
        %798 = vperm.xlu0 %797, %v785
        %v799 = vpop.permute.xlu0 %798
        %v801 = vmul.f32 %v799, %v493
        %803 = vrot.lane.b32.xlu0 %v801, 64
        %v804 = vpop.permute.xlu0 %803
        %v806 = vadd.f32 %v796, %v804
        %807 = vset.pattern.permute.xlu0 98
        %808 = vperm.xlu0 %807, %v785
        %v809 = vpop.permute.xlu0 %808
        %v811 = vmul.f32 %v809, %v507
        %813 = vrot.lane.b32.xlu0 %v811, 64
        %v814 = vpop.permute.xlu0 %813
        %v816 = vadd.f32 %v806, %v814
        %817 = vset.pattern.permute.xlu0 99
        %818 = vperm.xlu0 %817, %v785
        %v819 = vpop.permute.xlu0 %818
        %v821 = vmul.f32 %v819, %v521
        %823 = vrot.lane.b32.xlu0 %v821, 64
        %v824 = vpop.permute.xlu0 %823
        %v826 = vadd.f32 %v816, %v824
        %828 = vrot.lane.b32.xlu0 %v826, 64
        %v829 = vpop.permute.xlu0 %828
        %v831 = vadd.f32 %v709, %v829
        %v832 = vsel %vm442, %v831, 0.0
        %833 = vadd.xlane.f32.xlu0 %v832
        %v834 = vpop.xlane.xlu0 %833
        %v835 = vmul.f32 %v834, %v536
        %v836 = vsub.f32 %v831, %v835
        %v837 = vmul.f32 %v836, %v836
        %v838 = vsel %vm442, %v837, 0.0
        %839 = vadd.xlane.f32.xlu0 %v838
        %v840 = vpop.xlane.xlu0 %839
        %v841 = vmul.f32 %v840, 0.032258064
        %v842 = vrsqrt.pop %v841
        %v843 = vmul.f32 %v841, %v842
        %vm844 = vcmp.eq.f32.partialorder %v841, inf
        %v845 = vsel %vm844, %v841, %v843
        %vm846 = vcmp.eq.f32.partialorder %v841, 0.0
        %v847 = vand.u32 %v841, 2147483648
        %v848 = vsel %vm846, %v847, %v845
        %v849 = vmul.f32 %v365, %v836
        %v850 = vadd.f32 %v848, 1e-06
        %v851 = vrcp.pop %v850
        %v852 = vmul.f32 %v849, %v851
        %v853 = vadd.f32 %v852, %v372
        %s854 = scalar_lea.vmem %s305, 3 [#allocation2]
        %v855 = vld [vmem:[%s854] sm:$0x1]
        %v856 = vunpack.c.l.bf16 %v855
        %v857 = vmul.f32 %v856, 5.656854
        %v858 = vadd.f32 %v853, %v857
        %v859 = vpack.c.bf16 %v858, %v858
        %v861 = vsel %vm392, %v859, 0
        %863 = vmatprep.subr.bf16.mxu0 0
        %864 = vmatpush1.bf16.msra.mxu0 0
        %865 = vmatprep.subr.bf16.mxu0 0
        %866 = vmatpush1.bf16.msra.mxu0 0
        %867 = vmatprep.subr.bf16.mxu0 0
        %868 = vmatpush1.bf16.msra.mxu0 0
        %869 = vmatprep.subr.bf16.mxu0 0
        %870 = vmatpush1.bf16.msra.mxu0 0
        %871 = vmatprep.subr.bf16.mxu0 0
        %872 = vmatpush1.bf16.msra.mxu0 0
        %873 = vmatprep.subr.bf16.mxu0 0
        %874 = vmatpush1.bf16.msra.mxu0 0
        %875 = vmatprep.subr.bf16.mxu0 0
        %876 = vmatpush1.bf16.msra.mxu0 %v389
        %877 = vmatprep.subr.bf16.mxu0 0
        %878 = vmatpush1.bf16.msra.mxu0 %v388
        %879 = vmatprep.subr.bf16.mxu0 0
        %880 = vmatpush2.bf16.msra.mxu0 0
        %881 = vmatprep.subr.bf16.mxu0 0
        %882 = vmatpush2.bf16.msra.mxu0 0
        %883 = vmatprep.subr.bf16.mxu0 0
        %884 = vmatpush2.bf16.msra.mxu0 0
        %885 = vmatprep.subr.bf16.mxu0 0
        %886 = vmatpush2.bf16.msra.mxu0 0
        %887 = vmatprep.subr.bf16.mxu0 0
        %888 = vmatpush2.bf16.msra.mxu0 0
        %889 = vmatprep.subr.bf16.mxu0 0
        %890 = vmatpush2.bf16.msra.mxu0 0
        %891 = vmatprep.subr.bf16.mxu0 0
        %892 = vmatpush2.bf16.msra.mxu0 0
        %893 = vmatprep.subr.bf16.mxu0 0
        %894 = vmatpush2.bf16.msra.mxu0 0
        %895 = vmatprep.mubr.bf16.mxu0 0
        %896 = vmatmul.mubr.bf16.gmra.mxu0 %v861
        %v897 = vpop.f32.mrf.mxu0
        %v898 = vadd.f32 %v358, %v897
        %v899 = vpop.f32.mrf.mxu0
        %v900 = vpop.f32.mrf.mxu0
        %v901 = vpop.f32.mrf.mxu0
        %902 = vdwg.mxu0
        %v903 = vmul.f32 %v898, 0.17677669
        %905 = vrot.lane.b32.xlu0 %v898, 96
        %v906 = vpop.permute.xlu0 %905
        %v908 = vmul.f32 %v898, %v906
        %v909 = vsel %vm442, %v908, 0.0
        %910 = vadd.xlane.f32.xlu0 %v909
        %v911 = vpop.xlane.xlu0 %910
        %v912 = vmul.f32 %v911, 0.17677669
        %v913 = vsel %vm447, %v903, -inf
        %914 = vmax.xlane.f32.xlu0 %v913
        %v915 = vpop.xlane.xlu0 %914
        %v916 = vmax.f32 %v915, %v912
        %v917 = vsub.f32 %v912, %v916
        %v918 = vmul.f32 %v917, 1.442695
        %v919 = vpow.pop %v918
        %v920 = vsub.f32 %v903, %v916
        %v921 = vmul.f32 %v920, 1.442695
        %v922 = vpow.pop %v921
        %924 = vrot.lane.b32.xlu0 %v922, 32
        %v925 = vpop.permute.xlu0 %924
        %v927 = vsel %vm462, %v925, 0.0
        %928 = vadd.xlane.f32.xlu0 %v927
        %v929 = vpop.xlane.xlu0 %928
        %v930 = vadd.f32 %v919, %v929
        %v931 = vrcp.pop %v930
        %v932 = vmul.f32 %v919, %v931
        %v933 = vmul.f32 %v932, %v898
        %v934 = vmul.f32 %v922, %v931
        %936 = vset.pattern.permute.xlu0 96
        %937 = vperm.xlu0 %936, %v934
        %v938 = vpop.permute.xlu0 %937
        %v940 = vmul.f32 %v938, %v479
        %942 = vrot.lane.b32.xlu0 %v940, 64
        %v943 = vpop.permute.xlu0 %942
        %v945 = vadd.f32 %v933, %v943
        %946 = vset.pattern.permute.xlu0 97
        %947 = vperm.xlu0 %946, %v934
        %v948 = vpop.permute.xlu0 %947
        %v950 = vmul.f32 %v948, %v493
        %952 = vrot.lane.b32.xlu0 %v950, 64
        %v953 = vpop.permute.xlu0 %952
        %v955 = vadd.f32 %v945, %v953
        %956 = vset.pattern.permute.xlu0 98
        %957 = vperm.xlu0 %956, %v934
        %v958 = vpop.permute.xlu0 %957
        %v960 = vmul.f32 %v958, %v507
        %962 = vrot.lane.b32.xlu0 %v960, 64
        %v963 = vpop.permute.xlu0 %962
        %v965 = vadd.f32 %v955, %v963
        %966 = vset.pattern.permute.xlu0 99
        %967 = vperm.xlu0 %966, %v934
        %v968 = vpop.permute.xlu0 %967
        %v970 = vmul.f32 %v968, %v521
        %972 = vrot.lane.b32.xlu0 %v970, 64
        %v973 = vpop.permute.xlu0 %972
        %v975 = vadd.f32 %v965, %v973
        %977 = vrot.lane.b32.xlu0 %v975, 64
        %v978 = vpop.permute.xlu0 %977
        %v980 = vadd.f32 %v858, %v978
        %v981 = vsel %vm442, %v980, 0.0
        %982 = vadd.xlane.f32.xlu0 %v981
        %v983 = vpop.xlane.xlu0 %982
        %v984 = vmul.f32 %v983, %v536
        %v985 = vsub.f32 %v980, %v984
        %v986 = vmul.f32 %v985, %v985
        %v987 = vsel %vm442, %v986, 0.0
        %988 = vadd.xlane.f32.xlu0 %v987
        %v989 = vpop.xlane.xlu0 %988
        %v990 = vmul.f32 %v989, 0.032258064
        %v991 = vrsqrt.pop %v990
        %v992 = vmul.f32 %v990, %v991
        %vm993 = vcmp.eq.f32.partialorder %v990, inf
        %v994 = vsel %vm993, %v990, %v992
        %vm995 = vcmp.eq.f32.partialorder %v990, 0.0
        %v996 = vand.u32 %v990, 2147483648
        %v997 = vsel %vm995, %v996, %v994
        %v998 = vmul.f32 %v365, %v985
        %v999 = vadd.f32 %v997, 1e-06
        %v1000 = vrcp.pop %v999
        %v1001 = vmul.f32 %v998, %v1000
        %v1002 = vadd.f32 %v1001, %v372
        %1003 = vst.msk [vmem:[#allocation8] sm:$0x3] %vm442, %v1002
        // Predicated region
        $region65: #{tpu_custom_call.1} parent=47 // pred_check
          %p1004 = pneg %p212
        $region66: #{tpu_custom_call.1} parent=47 // pred_check_branch
          %1006 = sbr.rel (%p1004) target = $region68
        $region67: #{tpu_custom_call.1} parent=47 // pred_region
          %s1008 = ssub.s32 32, 32
          %1009 = vsyncadd [#allocation4], %s1008
          %s1010 = smul.addr %s27, 32
          %s1011 = scalar_lea.hbm %s7, %s1010
          %s1013 = sshll.u32 [#allocation8], 4
          %s1014 = int_to_ptr.vmem [resolvable:$true] %s1013
          %1016 = dma.vmem_to_hbm [thread:$0]  %s1014, 32, %s1011, [#allocation4]
        $region68: #{tpu_custom_call.1} parent=47 // pred_fallthru
          _
        // Predicated region
        $region69: #{tpu_custom_call.1} parent=47 // pred_check
          %p1017 = pneg %p212
        $region70: #{tpu_custom_call.1} parent=47 // pred_check_branch
          %1019 = sbr.rel (%p1017) target = $region72
        $region71: #{tpu_custom_call.1} parent=47 // pred_region
          %1020 = dma.done [#allocation4], 32
        $region72: #{tpu_custom_call.1} parent=47 // pred_fallthru
          _
      $region48: #{tpu_custom_call.1} parent=5 // pred_fallthru
        _
      %p1021 = scmp.le.s32.totalorder 2, %s18
      // Predicated region
      $region73: #{tpu_custom_call.1} parent=5 // pred_check
        %p1022 = pneg %p1021
      $region74: #{tpu_custom_call.1} parent=5 // pred_check_branch
        %1024 = sbr.rel (%p1022) target = $region76
      $region75: #{tpu_custom_call.1} parent=5 // pred_region
        %s1025 = ssub.s32 %s18, 2
      $region76: #{tpu_custom_call.1} parent=5 // pred_fallthru
        _
    $region6: #{tpu_custom_call.1} parent=1 // loop_footer
      %s22 = sadd.s32 1, %s18
    $region7: #{tpu_custom_call.1} parent=1 // loop_footer_branch
      %17 = sbr.rel target = $region3
    $region8: #{tpu_custom_call.1} parent=1 // loop_exit
      _
    %1026 = vsyncpa [#allocation3], 1
    %s1027 = scalar_lea.sflag [#allocation3], 1
    %1028 = vsyncpa %s1027, 1
    %1029 = vsyncpa [#allocation6], 1
    %1030 = vsyncpa [#allocation4], 1
    %s1031 = scalar_lea.sflag [#allocation4], 1
    %1032 = vsyncpa %s1031, 1

</llo_original>
